<compile_context>
chip_gen: v7x
topology: tpu7x:2x2x1
jax: 0.10.0
libtpu: 0.0.40
codegen_flags: <defaults>
</compile_context>

<pallas_src>
import functools

import jax
import jax.numpy as jnp
from jax.experimental import pallas as pl
from jax.experimental.pallas import tpu as pltpu

_LANES = 128


def _fused_conv_add_kernel(x_ref, x3_ref, w_ref, b_ref, v3_ref, v4_ref,
                           *, W, C2, Co):
    """Fused 3x3 conv(x1) + conv(x2) + bias (+ x3) on folded lane-dense planes.

    x_ref : (1, C2, S, L) f32 VMEM   -- x1 and x2 channels concatenated.
    x3_ref: (1, Co, S, L) f32 VMEM
    w_ref : (Co*C2*9,)    f32 SMEM   -- jnp.concatenate([w1, w2], axis=1).ravel()
    b_ref : (Co,)         f32 SMEM   -- b1 + b2
    """
    _, _, S, L = x_ref.shape

    # ---- boundary masks / selectors: built once, reused by every tap --------
    lane = jax.lax.broadcasted_iota(jnp.int32, (S, L), 1)
    sub = jax.lax.broadcasted_iota(jnp.int32, (S, L), 0)
    wcol = lane % W                                    # w coordinate (W | L)
    keep_next_row = jnp.logical_not((sub == S - 1) & (lane >= L - W))  # h+1 < H
    keep_prev_row = jnp.logical_not((sub == 0) & (lane < W))           # h-1 >= 0
    keep_w_plus = wcol != (W - 1)                                      # w+1 < W
    keep_w_minus = wcol != 0                                           # w-1 >= 0
    sel_next = lane < (L - W)
    sel_prev = lane >= W

    zero = jnp.float32(0.0)

    def read_next_row(p):
        # out[h, w] = p[h+1, w]   (0 where h+1 == H)
        r = pltpu.roll(p, L - W, axis=1)               # r[s,l] = p[s,(l+W)%L]
        rs = pltpu.roll(r, S - 1, axis=0) if S > 1 else r   # rs[s] = r[s+1]
        return jnp.where(keep_next_row, jnp.where(sel_next, r, rs), zero)

    def read_prev_row(p):
        # out[h, w] = p[h-1, w]   (0 where h == 0)
        r = pltpu.roll(p, W, axis=1)                   # r[s,l] = p[s,(l-W)%L]
        rs = pltpu.roll(r, 1, axis=0) if S > 1 else r        # rs[s] = r[s-1]
        return jnp.where(keep_prev_row, jnp.where(sel_prev, r, rs), zero)

    def read_col(y, dw):
        # out[h, w] = y[h, w+dw]  (0 at the w boundary).  Since W | L, the
        # lane-wrap positions are exactly the masked boundary columns, so one
        # lane roll suffices (no sublane fix-up needed).
        if dw == 1:
            return jnp.where(keep_w_plus, pltpu.roll(y, L - 1, axis=1), zero)
        return jnp.where(keep_w_minus, pltpu.roll(y, 1, axis=1), zero)

    for ni in range(x_ref.shape[0]):
        # Accumulators start at the pre-summed bias -> no epilogue add.
        accs = [jnp.full((S, L), b_ref[co], jnp.float32) for co in range(Co)]
        for cc in range(C2):
            p = x_ref[ni, cc]                          # (S, L) plane
            bases = ((-1, read_prev_row(p)), (0, p), (1, read_next_row(p)))
            for dh, y in bases:
                taps = ((-1, read_col(y, -1)), (0, y), (1, read_col(y, 1)))
                for dw, t in taps:
                    kh, kw = dh + 1, dw + 1
                    for co in range(Co):
                        widx = ((co * C2 + cc) * 3 + kh) * 3 + kw
                        accs[co] = accs[co] + w_ref[widx] * t
        # Per-channel stores: start the store tail as each channel finishes.
        for co in range(Co):
            v3c = accs[co]
            v3_ref[ni, co] = v3c
            v4_ref[ni, co] = v3c + x3_ref[ni, co]


def model_forward(x1, x2, x3, w1, b1, w2, b2):
    """x*: (N, C, H, W) f32; w*: (Co, C, 3, 3) PyTorch OIHW; b*: (Co,)."""
    N, C, H, W = x1.shape
    Co = w1.shape[0]
    L = _LANES
    # Folded lane-dense layout constraints (hold for the module's 32x32 images).
    assert (H * W) % L == 0 and L % W == 0 and W < L, \
        "folded lane-dense layout needs W | 128 and 128 | H*W"
    assert x3.shape[1] == Co, "x3 channels must match conv output channels"
    S = (H * W) // L
    C2 = 2 * C

    fold = lambda t: t.reshape(t.shape[0], -1, S, L)   # contiguous reshape only
    xc = jnp.concatenate([fold(x1), fold(x2)], axis=1).astype(jnp.float32)
    x3f = fold(x3).astype(jnp.float32)
    # Merge the two weight tensors along the input-channel axis and pre-sum bias.
    wc = jnp.concatenate([w1, w2], axis=1).reshape(-1).astype(jnp.float32)
    bsum = (b1 + b2).astype(jnp.float32)

    kernel = functools.partial(_fused_conv_add_kernel, W=W, C2=C2, Co=Co)
    smem = pl.BlockSpec(memory_space=pltpu.MemorySpace.SMEM)

    v3f, v4f = pl.pallas_call(
        kernel,
        out_shape=(jax.ShapeDtypeStruct((N, Co, S, L), jnp.float32),
                   jax.ShapeDtypeStruct((N, Co, S, L), jnp.float32)),
        grid=(N,),
        in_specs=[
            pl.BlockSpec((1, C2, S, L), lambda n: (n, 0, 0, 0)),
            pl.BlockSpec((1, Co, S, L), lambda n: (n, 0, 0, 0)),
            smem,   # merged weights (SMEM scalars)
            smem,   # pre-summed bias
        ],
        out_specs=(pl.BlockSpec((1, Co, S, L), lambda n: (n, 0, 0, 0)),
                   pl.BlockSpec((1, Co, S, L), lambda n: (n, 0, 0, 0))),
        compiler_params=pltpu.CompilerParams(
            dimension_semantics=("parallel",)),
    )(xc, x3f, wc, bsum)

    return v3f.reshape(N, Co, H, W), v4f.reshape(N, Co, H, W)


def _reference(x1, x2, x3, w1, b1, w2, b2):
    dn = jax.lax.conv_dimension_numbers(x1.shape, w1.shape,
                                        ('NCHW', 'OIHW', 'NCHW'))
    c1 = jax.lax.conv_general_dilated(x1, w1, (1, 1), ((1, 1), (1, 1)),
                                      dimension_numbers=dn)
    c2 = jax.lax.conv_general_dilated(x2, w2, (1, 1), ((1, 1), (1, 1)),
                                      dimension_numbers=dn)
    v3 = c1 + b1.reshape(1, -1, 1, 1) + c2 + b2.reshape(1, -1, 1, 1)
    v4 = v3 + x3
    return v3, v4


if __name__ == "__main__":
    key = jax.random.PRNGKey(0)
    k1, k2, k3, kw1, kb1, kw2, kb2 = jax.random.split(key, 7)

    # Shapes of the original PyTorch spec: (1, 3, 32, 32) inputs, Conv2d(3,3,3).
    N, C, H, W = 1, 3, 32, 32
    Co = 3

    x1 = jax.random.normal(k1, (N, C, H, W), jnp.float32)
    x2 = jax.random.normal(k2, (N, C, H, W), jnp.float32)
    x3 = jax.random.normal(k3, (N, C, H, W), jnp.float32)

    fan_in = C * 3 * 3
    bound = 1.0 / (fan_in ** 0.5)
    w1 = jax.random.uniform(kw1, (Co, C, 3, 3), jnp.float32, -bound, bound)
    b1 = jax.random.uniform(kb1, (Co,), jnp.float32, -bound, bound)
    w2 = jax.random.uniform(kw2, (Co, C, 3, 3), jnp.float32, -bound, bound)
    b2 = jax.random.uniform(kb2, (Co,), jnp.float32, -bound, bound)

    v3, v4 = jax.jit(model_forward)(x1, x2, x3, w1, b1, w2, b2)
    jax.block_until_ready((v3, v4))

    r3, r4 = _reference(x1, x2, x3, w1, b1, w2, b2)
    assert v3.shape == (N, Co, H, W) and v4.shape == (N, Co, H, W)
    assert jnp.allclose(v3, r3, atol=1e-4, rtol=1e-4), \
        float(jnp.max(jnp.abs(v3 - r3)))
    assert jnp.allclose(v4, r4, atol=1e-4, rtol=1e-4), \
        float(jnp.max(jnp.abs(v4 - r4)))

    print("KERNEL_OK")
</pallas_src>

<mosaic_0001>
module attributes {stable_mosaic.version = 11 : i64} {
  func.func @_fused_conv_add_kernel(%arg0: i32, %arg1: memref<1x6x8x128xf32, #tpu.memory_space<vmem>>, %arg2: memref<1x3x8x128xf32, #tpu.memory_space<vmem>>, %arg3: memref<162xf32, #tpu.memory_space<smem>>, %arg4: memref<3xf32, #tpu.memory_space<smem>>, %arg5: memref<1x3x8x128xf32, #tpu.memory_space<vmem>>, %arg6: memref<1x3x8x128xf32, #tpu.memory_space<vmem>>) attributes {dimension_semantics = [#tpu.dimension_semantics<parallel>], iteration_bounds = array<i64: 1>, scalar_prefetch = 0 : i64, scratch_operands = 0 : i64, tpu.core_type = #tpu.core_type<tc>, window_params = [{transform_indices = @transform_0, window_bounds = array<i64: 1, 6, 8, 128>}, {transform_indices = @transform_1, window_bounds = array<i64: 1, 3, 8, 128>}, {transform_indices = @transform_2, window_bounds = array<i64: 162>}, {transform_indices = @transform_3, window_bounds = array<i64: 3>}, {transform_indices = @transform_4, window_bounds = array<i64: 1, 3, 8, 128>}, {transform_indices = @transform_5, window_bounds = array<i64: 1, 3, 8, 128>}]} {
    %0 = tpu.iota {dimensions = array<i32: 1>} : vector<8x128xi32>
    %1 = tpu.iota {dimensions = array<i32: 0>} : vector<8x128xi32>
    %c32_i32 = arith.constant 32 : i32
    %c0_i32 = arith.constant 0 : i32
    %2 = arith.cmpi eq, %c32_i32, %c0_i32 : i32
    %c1_i32 = arith.constant 1 : i32
    %3 = arith.select %2, %c1_i32, %c32_i32 : i32
    %4 = vector.broadcast %3 : i32 to vector<8x128xi32>
    %5 = arith.remsi %0, %4 : vector<8x128xi32>
    %c0_i32_0 = arith.constant 0 : i32
    %6 = vector.broadcast %c0_i32_0 : i32 to vector<8x128xi32>
    %7 = arith.cmpi ne, %5, %6 : vector<8x128xi32>
    %c0_i32_1 = arith.constant 0 : i32
    %8 = vector.broadcast %c0_i32_1 : i32 to vector<8x128xi32>
    %9 = arith.cmpi slt, %5, %8 : vector<8x128xi32>
    %c0_i32_2 = arith.constant 0 : i32
    %10 = arith.cmpi slt, %3, %c0_i32_2 : i32
    %11 = vector.broadcast %10 : i1 to vector<8x128xi1>
    %12 = vector.broadcast %11 : vector<8x128xi1> to vector<8x128xi1>
    %13 = arith.xori %9, %12 : vector<8x128xi1>
    %14 = arith.andi %13, %7 : vector<8x128xi1>
    %15 = vector.broadcast %3 : i32 to vector<8x128xi32>
    %16 = arith.addi %5, %15 : vector<8x128xi32>
    %17 = arith.select %14, %16, %5 : vector<8x128xi1>, vector<8x128xi32>
    %c7_i32 = arith.constant 7 : i32
    %18 = vector.broadcast %c7_i32 : i32 to vector<8x128xi32>
    %19 = arith.cmpi eq, %1, %18 : vector<8x128xi32>
    %c96_i32 = arith.constant 96 : i32
    %20 = vector.broadcast %c96_i32 : i32 to vector<8x128xi32>
    %21 = arith.cmpi sge, %0, %20 : vector<8x128xi32>
    %22 = arith.andi %19, %21 : vector<8x128xi1>
    %cst = arith.constant dense<true> : vector<8x128xi1>
    %23 = arith.xori %22, %cst : vector<8x128xi1>
    %c0_i32_3 = arith.constant 0 : i32
    %24 = vector.broadcast %c0_i32_3 : i32 to vector<8x128xi32>
    %25 = arith.cmpi eq, %1, %24 : vector<8x128xi32>
    %c32_i32_4 = arith.constant 32 : i32
    %26 = vector.broadcast %c32_i32_4 : i32 to vector<8x128xi32>
    %27 = arith.cmpi slt, %0, %26 : vector<8x128xi32>
    %28 = arith.andi %25, %27 : vector<8x128xi1>
    %cst_5 = arith.constant dense<true> : vector<8x128xi1>
    %29 = arith.xori %28, %cst_5 : vector<8x128xi1>
    %c31_i32 = arith.constant 31 : i32
    %30 = vector.broadcast %c31_i32 : i32 to vector<8x128xi32>
    %31 = arith.cmpi ne, %17, %30 : vector<8x128xi32>
    %c0_i32_6 = arith.constant 0 : i32
    %32 = vector.broadcast %c0_i32_6 : i32 to vector<8x128xi32>
    %33 = arith.cmpi ne, %17, %32 : vector<8x128xi32>
    %c96_i32_7 = arith.constant 96 : i32
    %34 = vector.broadcast %c96_i32_7 : i32 to vector<8x128xi32>
    %35 = arith.cmpi slt, %0, %34 : vector<8x128xi32>
    %c32_i32_8 = arith.constant 32 : i32
    %36 = vector.broadcast %c32_i32_8 : i32 to vector<8x128xi32>
    %37 = arith.cmpi sge, %0, %36 : vector<8x128xi32>
    %c0 = arith.constant 0 : index
    %38 = memref.load %arg4[%c0] : memref<3xf32, #tpu.memory_space<smem>>
    %39 = vector.broadcast %38 : f32 to vector<8x128xf32>
    %c1 = arith.constant 1 : index
    %40 = memref.load %arg4[%c1] : memref<3xf32, #tpu.memory_space<smem>>
    %41 = vector.broadcast %40 : f32 to vector<8x128xf32>
    %c2 = arith.constant 2 : index
    %42 = memref.load %arg4[%c2] : memref<3xf32, #tpu.memory_space<smem>>
    %43 = vector.broadcast %42 : f32 to vector<8x128xf32>
    %c0_9 = arith.constant 0 : index
    %c0_10 = arith.constant 0 : index
    %c0_11 = arith.constant 0 : index
    %c0_12 = arith.constant 0 : index
    %44 = vector.load %arg1[%c0_9, %c0_10, %c0_11, %c0_12] : memref<1x6x8x128xf32, #tpu.memory_space<vmem>>, vector<1x1x8x128xf32>
    %45 = vector.shape_cast %44 : vector<1x1x8x128xf32> to vector<8x128xf32>
    %c32_i32_13 = arith.constant 32 : i32
    %46 = tpu.dynamic_rotate %45 by %c32_i32_13 dim 1 : vector<8x128xf32>, i32 -> vector<8x128xf32>
    %c1_i32_14 = arith.constant 1 : i32
    %47 = tpu.dynamic_rotate %46 by %c1_i32_14 dim 0 : vector<8x128xf32>, i32 -> vector<8x128xf32>
    %48 = arith.select %37, %46, %47 : vector<8x128xi1>, vector<8x128xf32>
    %cst_15 = arith.constant 0.000000e+00 : f32
    %49 = vector.broadcast %cst_15 : f32 to vector<8x128xf32>
    %50 = arith.select %29, %48, %49 : vector<8x128xi1>, vector<8x128xf32>
    %c96_i32_16 = arith.constant 96 : i32
    %51 = tpu.dynamic_rotate %45 by %c96_i32_16 dim 1 : vector<8x128xf32>, i32 -> vector<8x128xf32>
    %c7_i32_17 = arith.constant 7 : i32
    %52 = tpu.dynamic_rotate %51 by %c7_i32_17 dim 0 : vector<8x128xf32>, i32 -> vector<8x128xf32>
    %53 = arith.select %35, %51, %52 : vector<8x128xi1>, vector<8x128xf32>
    %cst_18 = arith.constant 0.000000e+00 : f32
    %54 = vector.broadcast %cst_18 : f32 to vector<8x128xf32>
    %55 = arith.select %23, %53, %54 : vector<8x128xi1>, vector<8x128xf32>
    %c1_i32_19 = arith.constant 1 : i32
    %56 = tpu.dynamic_rotate %50 by %c1_i32_19 dim 1 : vector<8x128xf32>, i32 -> vector<8x128xf32>
    %cst_20 = arith.constant 0.000000e+00 : f32
    %57 = vector.broadcast %cst_20 : f32 to vector<8x128xf32>
    %58 = arith.select %33, %56, %57 : vector<8x128xi1>, vector<8x128xf32>
    %c127_i32 = arith.constant 127 : i32
    %59 = tpu.dynamic_rotate %50 by %c127_i32 dim 1 : vector<8x128xf32>, i32 -> vector<8x128xf32>
    %cst_21 = arith.constant 0.000000e+00 : f32
    %60 = vector.broadcast %cst_21 : f32 to vector<8x128xf32>
    %61 = arith.select %31, %59, %60 : vector<8x128xi1>, vector<8x128xf32>
    %c0_22 = arith.constant 0 : index
    %62 = memref.load %arg3[%c0_22] : memref<162xf32, #tpu.memory_space<smem>>
    %63 = vector.broadcast %62 : f32 to vector<8x128xf32>
    %64 = arith.mulf %63, %58 : vector<8x128xf32>
    %65 = arith.addf %39, %64 : vector<8x128xf32>
    %c54 = arith.constant 54 : index
    %66 = memref.load %arg3[%c54] : memref<162xf32, #tpu.memory_space<smem>>
    %67 = vector.broadcast %66 : f32 to vector<8x128xf32>
    %68 = arith.mulf %67, %58 : vector<8x128xf32>
    %69 = arith.addf %41, %68 : vector<8x128xf32>
    %c108 = arith.constant 108 : index
    %70 = memref.load %arg3[%c108] : memref<162xf32, #tpu.memory_space<smem>>
    %71 = vector.broadcast %70 : f32 to vector<8x128xf32>
    %72 = arith.mulf %71, %58 : vector<8x128xf32>
    %73 = arith.addf %43, %72 : vector<8x128xf32>
    %c1_23 = arith.constant 1 : index
    %74 = memref.load %arg3[%c1_23] : memref<162xf32, #tpu.memory_space<smem>>
    %75 = vector.broadcast %74 : f32 to vector<8x128xf32>
    %76 = arith.mulf %75, %50 : vector<8x128xf32>
    %77 = arith.addf %65, %76 : vector<8x128xf32>
    %c55 = arith.constant 55 : index
    %78 = memref.load %arg3[%c55] : memref<162xf32, #tpu.memory_space<smem>>
    %79 = vector.broadcast %78 : f32 to vector<8x128xf32>
    %80 = arith.mulf %79, %50 : vector<8x128xf32>
    %81 = arith.addf %69, %80 : vector<8x128xf32>
    %c109 = arith.constant 109 : index
    %82 = memref.load %arg3[%c109] : memref<162xf32, #tpu.memory_space<smem>>
    %83 = vector.broadcast %82 : f32 to vector<8x128xf32>
    %84 = arith.mulf %83, %50 : vector<8x128xf32>
    %85 = arith.addf %73, %84 : vector<8x128xf32>
    %c2_24 = arith.constant 2 : index
    %86 = memref.load %arg3[%c2_24] : memref<162xf32, #tpu.memory_space<smem>>
    %87 = vector.broadcast %86 : f32 to vector<8x128xf32>
    %88 = arith.mulf %87, %61 : vector<8x128xf32>
    %89 = arith.addf %77, %88 : vector<8x128xf32>
    %c56 = arith.constant 56 : index
    %90 = memref.load %arg3[%c56] : memref<162xf32, #tpu.memory_space<smem>>
    %91 = vector.broadcast %90 : f32 to vector<8x128xf32>
    %92 = arith.mulf %91, %61 : vector<8x128xf32>
    %93 = arith.addf %81, %92 : vector<8x128xf32>
    %c110 = arith.constant 110 : index
    %94 = memref.load %arg3[%c110] : memref<162xf32, #tpu.memory_space<smem>>
    %95 = vector.broadcast %94 : f32 to vector<8x128xf32>
    %96 = arith.mulf %95, %61 : vector<8x128xf32>
    %97 = arith.addf %85, %96 : vector<8x128xf32>
    %c1_i32_25 = arith.constant 1 : i32
    %98 = tpu.dynamic_rotate %45 by %c1_i32_25 dim 1 : vector<8x128xf32>, i32 -> vector<8x128xf32>
    %cst_26 = arith.constant 0.000000e+00 : f32
    %99 = vector.broadcast %cst_26 : f32 to vector<8x128xf32>
    %100 = arith.select %33, %98, %99 : vector<8x128xi1>, vector<8x128xf32>
    %c127_i32_27 = arith.constant 127 : i32
    %101 = tpu.dynamic_rotate %45 by %c127_i32_27 dim 1 : vector<8x128xf32>, i32 -> vector<8x128xf32>
    %cst_28 = arith.constant 0.000000e+00 : f32
    %102 = vector.broadcast %cst_28 : f32 to vector<8x128xf32>
    %103 = arith.select %31, %101, %102 : vector<8x128xi1>, vector<8x128xf32>
    %c3 = arith.constant 3 : index
    %104 = memref.load %arg3[%c3] : memref<162xf32, #tpu.memory_space<smem>>
    %105 = vector.broadcast %104 : f32 to vector<8x128xf32>
    %106 = arith.mulf %105, %100 : vector<8x128xf32>
    %107 = arith.addf %89, %106 : vector<8x128xf32>
    %c57 = arith.constant 57 : index
    %108 = memref.load %arg3[%c57] : memref<162xf32, #tpu.memory_space<smem>>
    %109 = vector.broadcast %108 : f32 to vector<8x128xf32>
    %110 = arith.mulf %109, %100 : vector<8x128xf32>
    %111 = arith.addf %93, %110 : vector<8x128xf32>
    %c111 = arith.constant 111 : index
    %112 = memref.load %arg3[%c111] : memref<162xf32, #tpu.memory_space<smem>>
    %113 = vector.broadcast %112 : f32 to vector<8x128xf32>
    %114 = arith.mulf %113, %100 : vector<8x128xf32>
    %115 = arith.addf %97, %114 : vector<8x128xf32>
    %c4 = arith.constant 4 : index
    %116 = memref.load %arg3[%c4] : memref<162xf32, #tpu.memory_space<smem>>
    %117 = vector.broadcast %116 : f32 to vector<8x128xf32>
    %118 = arith.mulf %117, %45 : vector<8x128xf32>
    %119 = arith.addf %107, %118 : vector<8x128xf32>
    %c58 = arith.constant 58 : index
    %120 = memref.load %arg3[%c58] : memref<162xf32, #tpu.memory_space<smem>>
    %121 = vector.broadcast %120 : f32 to vector<8x128xf32>
    %122 = arith.mulf %121, %45 : vector<8x128xf32>
    %123 = arith.addf %111, %122 : vector<8x128xf32>
    %c112 = arith.constant 112 : index
    %124 = memref.load %arg3[%c112] : memref<162xf32, #tpu.memory_space<smem>>
    %125 = vector.broadcast %124 : f32 to vector<8x128xf32>
    %126 = arith.mulf %125, %45 : vector<8x128xf32>
    %127 = arith.addf %115, %126 : vector<8x128xf32>
    %c5 = arith.constant 5 : index
    %128 = memref.load %arg3[%c5] : memref<162xf32, #tpu.memory_space<smem>>
    %129 = vector.broadcast %128 : f32 to vector<8x128xf32>
    %130 = arith.mulf %129, %103 : vector<8x128xf32>
    %131 = arith.addf %119, %130 : vector<8x128xf32>
    %c59 = arith.constant 59 : index
    %132 = memref.load %arg3[%c59] : memref<162xf32, #tpu.memory_space<smem>>
    %133 = vector.broadcast %132 : f32 to vector<8x128xf32>
    %134 = arith.mulf %133, %103 : vector<8x128xf32>
    %135 = arith.addf %123, %134 : vector<8x128xf32>
    %c113 = arith.constant 113 : index
    %136 = memref.load %arg3[%c113] : memref<162xf32, #tpu.memory_space<smem>>
    %137 = vector.broadcast %136 : f32 to vector<8x128xf32>
    %138 = arith.mulf %137, %103 : vector<8x128xf32>
    %139 = arith.addf %127, %138 : vector<8x128xf32>
    %c1_i32_29 = arith.constant 1 : i32
    %140 = tpu.dynamic_rotate %55 by %c1_i32_29 dim 1 : vector<8x128xf32>, i32 -> vector<8x128xf32>
    %cst_30 = arith.constant 0.000000e+00 : f32
    %141 = vector.broadcast %cst_30 : f32 to vector<8x128xf32>
    %142 = arith.select %33, %140, %141 : vector<8x128xi1>, vector<8x128xf32>
    %c127_i32_31 = arith.constant 127 : i32
    %143 = tpu.dynamic_rotate %55 by %c127_i32_31 dim 1 : vector<8x128xf32>, i32 -> vector<8x128xf32>
    %cst_32 = arith.constant 0.000000e+00 : f32
    %144 = vector.broadcast %cst_32 : f32 to vector<8x128xf32>
    %145 = arith.select %31, %143, %144 : vector<8x128xi1>, vector<8x128xf32>
    %c6 = arith.constant 6 : index
    %146 = memref.load %arg3[%c6] : memref<162xf32, #tpu.memory_space<smem>>
    %147 = vector.broadcast %146 : f32 to vector<8x128xf32>
    %148 = arith.mulf %147, %142 : vector<8x128xf32>
    %149 = arith.addf %131, %148 : vector<8x128xf32>
    %c60 = arith.constant 60 : index
    %150 = memref.load %arg3[%c60] : memref<162xf32, #tpu.memory_space<smem>>
    %151 = vector.broadcast %150 : f32 to vector<8x128xf32>
    %152 = arith.mulf %151, %142 : vector<8x128xf32>
    %153 = arith.addf %135, %152 : vector<8x128xf32>
    %c114 = arith.constant 114 : index
    %154 = memref.load %arg3[%c114] : memref<162xf32, #tpu.memory_space<smem>>
    %155 = vector.broadcast %154 : f32 to vector<8x128xf32>
    %156 = arith.mulf %155, %142 : vector<8x128xf32>
    %157 = arith.addf %139, %156 : vector<8x128xf32>
    %c7 = arith.constant 7 : index
    %158 = memref.load %arg3[%c7] : memref<162xf32, #tpu.memory_space<smem>>
    %159 = vector.broadcast %158 : f32 to vector<8x128xf32>
    %160 = arith.mulf %159, %55 : vector<8x128xf32>
    %161 = arith.addf %149, %160 : vector<8x128xf32>
    %c61 = arith.constant 61 : index
    %162 = memref.load %arg3[%c61] : memref<162xf32, #tpu.memory_space<smem>>
    %163 = vector.broadcast %162 : f32 to vector<8x128xf32>
    %164 = arith.mulf %163, %55 : vector<8x128xf32>
    %165 = arith.addf %153, %164 : vector<8x128xf32>
    %c115 = arith.constant 115 : index
    %166 = memref.load %arg3[%c115] : memref<162xf32, #tpu.memory_space<smem>>
    %167 = vector.broadcast %166 : f32 to vector<8x128xf32>
    %168 = arith.mulf %167, %55 : vector<8x128xf32>
    %169 = arith.addf %157, %168 : vector<8x128xf32>
    %c8 = arith.constant 8 : index
    %170 = memref.load %arg3[%c8] : memref<162xf32, #tpu.memory_space<smem>>
    %171 = vector.broadcast %170 : f32 to vector<8x128xf32>
    %172 = arith.mulf %171, %145 : vector<8x128xf32>
    %173 = arith.addf %161, %172 : vector<8x128xf32>
    %c62 = arith.constant 62 : index
    %174 = memref.load %arg3[%c62] : memref<162xf32, #tpu.memory_space<smem>>
    %175 = vector.broadcast %174 : f32 to vector<8x128xf32>
    %176 = arith.mulf %175, %145 : vector<8x128xf32>
    %177 = arith.addf %165, %176 : vector<8x128xf32>
    %c116 = arith.constant 116 : index
    %178 = memref.load %arg3[%c116] : memref<162xf32, #tpu.memory_space<smem>>
    %179 = vector.broadcast %178 : f32 to vector<8x128xf32>
    %180 = arith.mulf %179, %145 : vector<8x128xf32>
    %181 = arith.addf %169, %180 : vector<8x128xf32>
    %c0_33 = arith.constant 0 : index
    %c1_34 = arith.constant 1 : index
    %c0_35 = arith.constant 0 : index
    %c0_36 = arith.constant 0 : index
    %182 = vector.load %arg1[%c0_33, %c1_34, %c0_35, %c0_36] : memref<1x6x8x128xf32, #tpu.memory_space<vmem>>, vector<1x1x8x128xf32>
    %183 = vector.shape_cast %182 : vector<1x1x8x128xf32> to vector<8x128xf32>
    %c32_i32_37 = arith.constant 32 : i32
    %184 = tpu.dynamic_rotate %183 by %c32_i32_37 dim 1 : vector<8x128xf32>, i32 -> vector<8x128xf32>
    %c1_i32_38 = arith.constant 1 : i32
    %185 = tpu.dynamic_rotate %184 by %c1_i32_38 dim 0 : vector<8x128xf32>, i32 -> vector<8x128xf32>
    %186 = arith.select %37, %184, %185 : vector<8x128xi1>, vector<8x128xf32>
    %cst_39 = arith.constant 0.000000e+00 : f32
    %187 = vector.broadcast %cst_39 : f32 to vector<8x128xf32>
    %188 = arith.select %29, %186, %187 : vector<8x128xi1>, vector<8x128xf32>
    %c96_i32_40 = arith.constant 96 : i32
    %189 = tpu.dynamic_rotate %183 by %c96_i32_40 dim 1 : vector<8x128xf32>, i32 -> vector<8x128xf32>
    %c7_i32_41 = arith.constant 7 : i32
    %190 = tpu.dynamic_rotate %189 by %c7_i32_41 dim 0 : vector<8x128xf32>, i32 -> vector<8x128xf32>
    %191 = arith.select %35, %189, %190 : vector<8x128xi1>, vector<8x128xf32>
    %cst_42 = arith.constant 0.000000e+00 : f32
    %192 = vector.broadcast %cst_42 : f32 to vector<8x128xf32>
    %193 = arith.select %23, %191, %192 : vector<8x128xi1>, vector<8x128xf32>
    %c1_i32_43 = arith.constant 1 : i32
    %194 = tpu.dynamic_rotate %188 by %c1_i32_43 dim 1 : vector<8x128xf32>, i32 -> vector<8x128xf32>
    %cst_44 = arith.constant 0.000000e+00 : f32
    %195 = vector.broadcast %cst_44 : f32 to vector<8x128xf32>
    %196 = arith.select %33, %194, %195 : vector<8x128xi1>, vector<8x128xf32>
    %c127_i32_45 = arith.constant 127 : i32
    %197 = tpu.dynamic_rotate %188 by %c127_i32_45 dim 1 : vector<8x128xf32>, i32 -> vector<8x128xf32>
    %cst_46 = arith.constant 0.000000e+00 : f32
    %198 = vector.broadcast %cst_46 : f32 to vector<8x128xf32>
    %199 = arith.select %31, %197, %198 : vector<8x128xi1>, vector<8x128xf32>
    %c9 = arith.constant 9 : index
    %200 = memref.load %arg3[%c9] : memref<162xf32, #tpu.memory_space<smem>>
    %201 = vector.broadcast %200 : f32 to vector<8x128xf32>
    %202 = arith.mulf %201, %196 : vector<8x128xf32>
    %203 = arith.addf %173, %202 : vector<8x128xf32>
    %c63 = arith.constant 63 : index
    %204 = memref.load %arg3[%c63] : memref<162xf32, #tpu.memory_space<smem>>
    %205 = vector.broadcast %204 : f32 to vector<8x128xf32>
    %206 = arith.mulf %205, %196 : vector<8x128xf32>
    %207 = arith.addf %177, %206 : vector<8x128xf32>
    %c117 = arith.constant 117 : index
    %208 = memref.load %arg3[%c117] : memref<162xf32, #tpu.memory_space<smem>>
    %209 = vector.broadcast %208 : f32 to vector<8x128xf32>
    %210 = arith.mulf %209, %196 : vector<8x128xf32>
    %211 = arith.addf %181, %210 : vector<8x128xf32>
    %c10 = arith.constant 10 : index
    %212 = memref.load %arg3[%c10] : memref<162xf32, #tpu.memory_space<smem>>
    %213 = vector.broadcast %212 : f32 to vector<8x128xf32>
    %214 = arith.mulf %213, %188 : vector<8x128xf32>
    %215 = arith.addf %203, %214 : vector<8x128xf32>
    %c64 = arith.constant 64 : index
    %216 = memref.load %arg3[%c64] : memref<162xf32, #tpu.memory_space<smem>>
    %217 = vector.broadcast %216 : f32 to vector<8x128xf32>
    %218 = arith.mulf %217, %188 : vector<8x128xf32>
    %219 = arith.addf %207, %218 : vector<8x128xf32>
    %c118 = arith.constant 118 : index
    %220 = memref.load %arg3[%c118] : memref<162xf32, #tpu.memory_space<smem>>
    %221 = vector.broadcast %220 : f32 to vector<8x128xf32>
    %222 = arith.mulf %221, %188 : vector<8x128xf32>
    %223 = arith.addf %211, %222 : vector<8x128xf32>
    %c11 = arith.constant 11 : index
    %224 = memref.load %arg3[%c11] : memref<162xf32, #tpu.memory_space<smem>>
    %225 = vector.broadcast %224 : f32 to vector<8x128xf32>
    %226 = arith.mulf %225, %199 : vector<8x128xf32>
    %227 = arith.addf %215, %226 : vector<8x128xf32>
    %c65 = arith.constant 65 : index
    %228 = memref.load %arg3[%c65] : memref<162xf32, #tpu.memory_space<smem>>
    %229 = vector.broadcast %228 : f32 to vector<8x128xf32>
    %230 = arith.mulf %229, %199 : vector<8x128xf32>
    %231 = arith.addf %219, %230 : vector<8x128xf32>
    %c119 = arith.constant 119 : index
    %232 = memref.load %arg3[%c119] : memref<162xf32, #tpu.memory_space<smem>>
    %233 = vector.broadcast %232 : f32 to vector<8x128xf32>
    %234 = arith.mulf %233, %199 : vector<8x128xf32>
    %235 = arith.addf %223, %234 : vector<8x128xf32>
    %c1_i32_47 = arith.constant 1 : i32
    %236 = tpu.dynamic_rotate %183 by %c1_i32_47 dim 1 : vector<8x128xf32>, i32 -> vector<8x128xf32>
    %cst_48 = arith.constant 0.000000e+00 : f32
    %237 = vector.broadcast %cst_48 : f32 to vector<8x128xf32>
    %238 = arith.select %33, %236, %237 : vector<8x128xi1>, vector<8x128xf32>
    %c127_i32_49 = arith.constant 127 : i32
    %239 = tpu.dynamic_rotate %183 by %c127_i32_49 dim 1 : vector<8x128xf32>, i32 -> vector<8x128xf32>
    %cst_50 = arith.constant 0.000000e+00 : f32
    %240 = vector.broadcast %cst_50 : f32 to vector<8x128xf32>
    %241 = arith.select %31, %239, %240 : vector<8x128xi1>, vector<8x128xf32>
    %c12 = arith.constant 12 : index
    %242 = memref.load %arg3[%c12] : memref<162xf32, #tpu.memory_space<smem>>
    %243 = vector.broadcast %242 : f32 to vector<8x128xf32>
    %244 = arith.mulf %243, %238 : vector<8x128xf32>
    %245 = arith.addf %227, %244 : vector<8x128xf32>
    %c66 = arith.constant 66 : index
    %246 = memref.load %arg3[%c66] : memref<162xf32, #tpu.memory_space<smem>>
    %247 = vector.broadcast %246 : f32 to vector<8x128xf32>
    %248 = arith.mulf %247, %238 : vector<8x128xf32>
    %249 = arith.addf %231, %248 : vector<8x128xf32>
    %c120 = arith.constant 120 : index
    %250 = memref.load %arg3[%c120] : memref<162xf32, #tpu.memory_space<smem>>
    %251 = vector.broadcast %250 : f32 to vector<8x128xf32>
    %252 = arith.mulf %251, %238 : vector<8x128xf32>
    %253 = arith.addf %235, %252 : vector<8x128xf32>
    %c13 = arith.constant 13 : index
    %254 = memref.load %arg3[%c13] : memref<162xf32, #tpu.memory_space<smem>>
    %255 = vector.broadcast %254 : f32 to vector<8x128xf32>
    %256 = arith.mulf %255, %183 : vector<8x128xf32>
    %257 = arith.addf %245, %256 : vector<8x128xf32>
    %c67 = arith.constant 67 : index
    %258 = memref.load %arg3[%c67] : memref<162xf32, #tpu.memory_space<smem>>
    %259 = vector.broadcast %258 : f32 to vector<8x128xf32>
    %260 = arith.mulf %259, %183 : vector<8x128xf32>
    %261 = arith.addf %249, %260 : vector<8x128xf32>
    %c121 = arith.constant 121 : index
    %262 = memref.load %arg3[%c121] : memref<162xf32, #tpu.memory_space<smem>>
    %263 = vector.broadcast %262 : f32 to vector<8x128xf32>
    %264 = arith.mulf %263, %183 : vector<8x128xf32>
    %265 = arith.addf %253, %264 : vector<8x128xf32>
    %c14 = arith.constant 14 : index
    %266 = memref.load %arg3[%c14] : memref<162xf32, #tpu.memory_space<smem>>
    %267 = vector.broadcast %266 : f32 to vector<8x128xf32>
    %268 = arith.mulf %267, %241 : vector<8x128xf32>
    %269 = arith.addf %257, %268 : vector<8x128xf32>
    %c68 = arith.constant 68 : index
    %270 = memref.load %arg3[%c68] : memref<162xf32, #tpu.memory_space<smem>>
    %271 = vector.broadcast %270 : f32 to vector<8x128xf32>
    %272 = arith.mulf %271, %241 : vector<8x128xf32>
    %273 = arith.addf %261, %272 : vector<8x128xf32>
    %c122 = arith.constant 122 : index
    %274 = memref.load %arg3[%c122] : memref<162xf32, #tpu.memory_space<smem>>
    %275 = vector.broadcast %274 : f32 to vector<8x128xf32>
    %276 = arith.mulf %275, %241 : vector<8x128xf32>
    %277 = arith.addf %265, %276 : vector<8x128xf32>
    %c1_i32_51 = arith.constant 1 : i32
    %278 = tpu.dynamic_rotate %193 by %c1_i32_51 dim 1 : vector<8x128xf32>, i32 -> vector<8x128xf32>
    %cst_52 = arith.constant 0.000000e+00 : f32
    %279 = vector.broadcast %cst_52 : f32 to vector<8x128xf32>
    %280 = arith.select %33, %278, %279 : vector<8x128xi1>, vector<8x128xf32>
    %c127_i32_53 = arith.constant 127 : i32
    %281 = tpu.dynamic_rotate %193 by %c127_i32_53 dim 1 : vector<8x128xf32>, i32 -> vector<8x128xf32>
    %cst_54 = arith.constant 0.000000e+00 : f32
    %282 = vector.broadcast %cst_54 : f32 to vector<8x128xf32>
    %283 = arith.select %31, %281, %282 : vector<8x128xi1>, vector<8x128xf32>
    %c15 = arith.constant 15 : index
    %284 = memref.load %arg3[%c15] : memref<162xf32, #tpu.memory_space<smem>>
    %285 = vector.broadcast %284 : f32 to vector<8x128xf32>
    %286 = arith.mulf %285, %280 : vector<8x128xf32>
    %287 = arith.addf %269, %286 : vector<8x128xf32>
    %c69 = arith.constant 69 : index
    %288 = memref.load %arg3[%c69] : memref<162xf32, #tpu.memory_space<smem>>
    %289 = vector.broadcast %288 : f32 to vector<8x128xf32>
    %290 = arith.mulf %289, %280 : vector<8x128xf32>
    %291 = arith.addf %273, %290 : vector<8x128xf32>
    %c123 = arith.constant 123 : index
    %292 = memref.load %arg3[%c123] : memref<162xf32, #tpu.memory_space<smem>>
    %293 = vector.broadcast %292 : f32 to vector<8x128xf32>
    %294 = arith.mulf %293, %280 : vector<8x128xf32>
    %295 = arith.addf %277, %294 : vector<8x128xf32>
    %c16 = arith.constant 16 : index
    %296 = memref.load %arg3[%c16] : memref<162xf32, #tpu.memory_space<smem>>
    %297 = vector.broadcast %296 : f32 to vector<8x128xf32>
    %298 = arith.mulf %297, %193 : vector<8x128xf32>
    %299 = arith.addf %287, %298 : vector<8x128xf32>
    %c70 = arith.constant 70 : index
    %300 = memref.load %arg3[%c70] : memref<162xf32, #tpu.memory_space<smem>>
    %301 = vector.broadcast %300 : f32 to vector<8x128xf32>
    %302 = arith.mulf %301, %193 : vector<8x128xf32>
    %303 = arith.addf %291, %302 : vector<8x128xf32>
    %c124 = arith.constant 124 : index
    %304 = memref.load %arg3[%c124] : memref<162xf32, #tpu.memory_space<smem>>
    %305 = vector.broadcast %304 : f32 to vector<8x128xf32>
    %306 = arith.mulf %305, %193 : vector<8x128xf32>
    %307 = arith.addf %295, %306 : vector<8x128xf32>
    %c17 = arith.constant 17 : index
    %308 = memref.load %arg3[%c17] : memref<162xf32, #tpu.memory_space<smem>>
    %309 = vector.broadcast %308 : f32 to vector<8x128xf32>
    %310 = arith.mulf %309, %283 : vector<8x128xf32>
    %311 = arith.addf %299, %310 : vector<8x128xf32>
    %c71 = arith.constant 71 : index
    %312 = memref.load %arg3[%c71] : memref<162xf32, #tpu.memory_space<smem>>
    %313 = vector.broadcast %312 : f32 to vector<8x128xf32>
    %314 = arith.mulf %313, %283 : vector<8x128xf32>
    %315 = arith.addf %303, %314 : vector<8x128xf32>
    %c125 = arith.constant 125 : index
    %316 = memref.load %arg3[%c125] : memref<162xf32, #tpu.memory_space<smem>>
    %317 = vector.broadcast %316 : f32 to vector<8x128xf32>
    %318 = arith.mulf %317, %283 : vector<8x128xf32>
    %319 = arith.addf %307, %318 : vector<8x128xf32>
    %c0_55 = arith.constant 0 : index
    %c2_56 = arith.constant 2 : index
    %c0_57 = arith.constant 0 : index
    %c0_58 = arith.constant 0 : index
    %320 = vector.load %arg1[%c0_55, %c2_56, %c0_57, %c0_58] : memref<1x6x8x128xf32, #tpu.memory_space<vmem>>, vector<1x1x8x128xf32>
    %321 = vector.shape_cast %320 : vector<1x1x8x128xf32> to vector<8x128xf32>
    %c32_i32_59 = arith.constant 32 : i32
    %322 = tpu.dynamic_rotate %321 by %c32_i32_59 dim 1 : vector<8x128xf32>, i32 -> vector<8x128xf32>
    %c1_i32_60 = arith.constant 1 : i32
    %323 = tpu.dynamic_rotate %322 by %c1_i32_60 dim 0 : vector<8x128xf32>, i32 -> vector<8x128xf32>
    %324 = arith.select %37, %322, %323 : vector<8x128xi1>, vector<8x128xf32>
    %cst_61 = arith.constant 0.000000e+00 : f32
    %325 = vector.broadcast %cst_61 : f32 to vector<8x128xf32>
    %326 = arith.select %29, %324, %325 : vector<8x128xi1>, vector<8x128xf32>
    %c96_i32_62 = arith.constant 96 : i32
    %327 = tpu.dynamic_rotate %321 by %c96_i32_62 dim 1 : vector<8x128xf32>, i32 -> vector<8x128xf32>
    %c7_i32_63 = arith.constant 7 : i32
    %328 = tpu.dynamic_rotate %327 by %c7_i32_63 dim 0 : vector<8x128xf32>, i32 -> vector<8x128xf32>
    %329 = arith.select %35, %327, %328 : vector<8x128xi1>, vector<8x128xf32>
    %cst_64 = arith.constant 0.000000e+00 : f32
    %330 = vector.broadcast %cst_64 : f32 to vector<8x128xf32>
    %331 = arith.select %23, %329, %330 : vector<8x128xi1>, vector<8x128xf32>
    %c1_i32_65 = arith.constant 1 : i32
    %332 = tpu.dynamic_rotate %326 by %c1_i32_65 dim 1 : vector<8x128xf32>, i32 -> vector<8x128xf32>
    %cst_66 = arith.constant 0.000000e+00 : f32
    %333 = vector.broadcast %cst_66 : f32 to vector<8x128xf32>
    %334 = arith.select %33, %332, %333 : vector<8x128xi1>, vector<8x128xf32>
    %c127_i32_67 = arith.constant 127 : i32
    %335 = tpu.dynamic_rotate %326 by %c127_i32_67 dim 1 : vector<8x128xf32>, i32 -> vector<8x128xf32>
    %cst_68 = arith.constant 0.000000e+00 : f32
    %336 = vector.broadcast %cst_68 : f32 to vector<8x128xf32>
    %337 = arith.select %31, %335, %336 : vector<8x128xi1>, vector<8x128xf32>
    %c18 = arith.constant 18 : index
    %338 = memref.load %arg3[%c18] : memref<162xf32, #tpu.memory_space<smem>>
    %339 = vector.broadcast %338 : f32 to vector<8x128xf32>
    %340 = arith.mulf %339, %334 : vector<8x128xf32>
    %341 = arith.addf %311, %340 : vector<8x128xf32>
    %c72 = arith.constant 72 : index
    %342 = memref.load %arg3[%c72] : memref<162xf32, #tpu.memory_space<smem>>
    %343 = vector.broadcast %342 : f32 to vector<8x128xf32>
    %344 = arith.mulf %343, %334 : vector<8x128xf32>
    %345 = arith.addf %315, %344 : vector<8x128xf32>
    %c126 = arith.constant 126 : index
    %346 = memref.load %arg3[%c126] : memref<162xf32, #tpu.memory_space<smem>>
    %347 = vector.broadcast %346 : f32 to vector<8x128xf32>
    %348 = arith.mulf %347, %334 : vector<8x128xf32>
    %349 = arith.addf %319, %348 : vector<8x128xf32>
    %c19 = arith.constant 19 : index
    %350 = memref.load %arg3[%c19] : memref<162xf32, #tpu.memory_space<smem>>
    %351 = vector.broadcast %350 : f32 to vector<8x128xf32>
    %352 = arith.mulf %351, %326 : vector<8x128xf32>
    %353 = arith.addf %341, %352 : vector<8x128xf32>
    %c73 = arith.constant 73 : index
    %354 = memref.load %arg3[%c73] : memref<162xf32, #tpu.memory_space<smem>>
    %355 = vector.broadcast %354 : f32 to vector<8x128xf32>
    %356 = arith.mulf %355, %326 : vector<8x128xf32>
    %357 = arith.addf %345, %356 : vector<8x128xf32>
    %c127 = arith.constant 127 : index
    %358 = memref.load %arg3[%c127] : memref<162xf32, #tpu.memory_space<smem>>
    %359 = vector.broadcast %358 : f32 to vector<8x128xf32>
    %360 = arith.mulf %359, %326 : vector<8x128xf32>
    %361 = arith.addf %349, %360 : vector<8x128xf32>
    %c20 = arith.constant 20 : index
    %362 = memref.load %arg3[%c20] : memref<162xf32, #tpu.memory_space<smem>>
    %363 = vector.broadcast %362 : f32 to vector<8x128xf32>
    %364 = arith.mulf %363, %337 : vector<8x128xf32>
    %365 = arith.addf %353, %364 : vector<8x128xf32>
    %c74 = arith.constant 74 : index
    %366 = memref.load %arg3[%c74] : memref<162xf32, #tpu.memory_space<smem>>
    %367 = vector.broadcast %366 : f32 to vector<8x128xf32>
    %368 = arith.mulf %367, %337 : vector<8x128xf32>
    %369 = arith.addf %357, %368 : vector<8x128xf32>
    %c128 = arith.constant 128 : index
    %370 = memref.load %arg3[%c128] : memref<162xf32, #tpu.memory_space<smem>>
    %371 = vector.broadcast %370 : f32 to vector<8x128xf32>
    %372 = arith.mulf %371, %337 : vector<8x128xf32>
    %373 = arith.addf %361, %372 : vector<8x128xf32>
    %c1_i32_69 = arith.constant 1 : i32
    %374 = tpu.dynamic_rotate %321 by %c1_i32_69 dim 1 : vector<8x128xf32>, i32 -> vector<8x128xf32>
    %cst_70 = arith.constant 0.000000e+00 : f32
    %375 = vector.broadcast %cst_70 : f32 to vector<8x128xf32>
    %376 = arith.select %33, %374, %375 : vector<8x128xi1>, vector<8x128xf32>
    %c127_i32_71 = arith.constant 127 : i32
    %377 = tpu.dynamic_rotate %321 by %c127_i32_71 dim 1 : vector<8x128xf32>, i32 -> vector<8x128xf32>
    %cst_72 = arith.constant 0.000000e+00 : f32
    %378 = vector.broadcast %cst_72 : f32 to vector<8x128xf32>
    %379 = arith.select %31, %377, %378 : vector<8x128xi1>, vector<8x128xf32>
    %c21 = arith.constant 21 : index
    %380 = memref.load %arg3[%c21] : memref<162xf32, #tpu.memory_space<smem>>
    %381 = vector.broadcast %380 : f32 to vector<8x128xf32>
    %382 = arith.mulf %381, %376 : vector<8x128xf32>
    %383 = arith.addf %365, %382 : vector<8x128xf32>
    %c75 = arith.constant 75 : index
    %384 = memref.load %arg3[%c75] : memref<162xf32, #tpu.memory_space<smem>>
    %385 = vector.broadcast %384 : f32 to vector<8x128xf32>
    %386 = arith.mulf %385, %376 : vector<8x128xf32>
    %387 = arith.addf %369, %386 : vector<8x128xf32>
    %c129 = arith.constant 129 : index
    %388 = memref.load %arg3[%c129] : memref<162xf32, #tpu.memory_space<smem>>
    %389 = vector.broadcast %388 : f32 to vector<8x128xf32>
    %390 = arith.mulf %389, %376 : vector<8x128xf32>
    %391 = arith.addf %373, %390 : vector<8x128xf32>
    %c22 = arith.constant 22 : index
    %392 = memref.load %arg3[%c22] : memref<162xf32, #tpu.memory_space<smem>>
    %393 = vector.broadcast %392 : f32 to vector<8x128xf32>
    %394 = arith.mulf %393, %321 : vector<8x128xf32>
    %395 = arith.addf %383, %394 : vector<8x128xf32>
    %c76 = arith.constant 76 : index
    %396 = memref.load %arg3[%c76] : memref<162xf32, #tpu.memory_space<smem>>
    %397 = vector.broadcast %396 : f32 to vector<8x128xf32>
    %398 = arith.mulf %397, %321 : vector<8x128xf32>
    %399 = arith.addf %387, %398 : vector<8x128xf32>
    %c130 = arith.constant 130 : index
    %400 = memref.load %arg3[%c130] : memref<162xf32, #tpu.memory_space<smem>>
    %401 = vector.broadcast %400 : f32 to vector<8x128xf32>
    %402 = arith.mulf %401, %321 : vector<8x128xf32>
    %403 = arith.addf %391, %402 : vector<8x128xf32>
    %c23 = arith.constant 23 : index
    %404 = memref.load %arg3[%c23] : memref<162xf32, #tpu.memory_space<smem>>
    %405 = vector.broadcast %404 : f32 to vector<8x128xf32>
    %406 = arith.mulf %405, %379 : vector<8x128xf32>
    %407 = arith.addf %395, %406 : vector<8x128xf32>
    %c77 = arith.constant 77 : index
    %408 = memref.load %arg3[%c77] : memref<162xf32, #tpu.memory_space<smem>>
    %409 = vector.broadcast %408 : f32 to vector<8x128xf32>
    %410 = arith.mulf %409, %379 : vector<8x128xf32>
    %411 = arith.addf %399, %410 : vector<8x128xf32>
    %c131 = arith.constant 131 : index
    %412 = memref.load %arg3[%c131] : memref<162xf32, #tpu.memory_space<smem>>
    %413 = vector.broadcast %412 : f32 to vector<8x128xf32>
    %414 = arith.mulf %413, %379 : vector<8x128xf32>
    %415 = arith.addf %403, %414 : vector<8x128xf32>
    %c1_i32_73 = arith.constant 1 : i32
    %416 = tpu.dynamic_rotate %331 by %c1_i32_73 dim 1 : vector<8x128xf32>, i32 -> vector<8x128xf32>
    %cst_74 = arith.constant 0.000000e+00 : f32
    %417 = vector.broadcast %cst_74 : f32 to vector<8x128xf32>
    %418 = arith.select %33, %416, %417 : vector<8x128xi1>, vector<8x128xf32>
    %c127_i32_75 = arith.constant 127 : i32
    %419 = tpu.dynamic_rotate %331 by %c127_i32_75 dim 1 : vector<8x128xf32>, i32 -> vector<8x128xf32>
    %cst_76 = arith.constant 0.000000e+00 : f32
    %420 = vector.broadcast %cst_76 : f32 to vector<8x128xf32>
    %421 = arith.select %31, %419, %420 : vector<8x128xi1>, vector<8x128xf32>
    %c24 = arith.constant 24 : index
    %422 = memref.load %arg3[%c24] : memref<162xf32, #tpu.memory_space<smem>>
    %423 = vector.broadcast %422 : f32 to vector<8x128xf32>
    %424 = arith.mulf %423, %418 : vector<8x128xf32>
    %425 = arith.addf %407, %424 : vector<8x128xf32>
    %c78 = arith.constant 78 : index
    %426 = memref.load %arg3[%c78] : memref<162xf32, #tpu.memory_space<smem>>
    %427 = vector.broadcast %426 : f32 to vector<8x128xf32>
    %428 = arith.mulf %427, %418 : vector<8x128xf32>
    %429 = arith.addf %411, %428 : vector<8x128xf32>
    %c132 = arith.constant 132 : index
    %430 = memref.load %arg3[%c132] : memref<162xf32, #tpu.memory_space<smem>>
    %431 = vector.broadcast %430 : f32 to vector<8x128xf32>
    %432 = arith.mulf %431, %418 : vector<8x128xf32>
    %433 = arith.addf %415, %432 : vector<8x128xf32>
    %c25 = arith.constant 25 : index
    %434 = memref.load %arg3[%c25] : memref<162xf32, #tpu.memory_space<smem>>
    %435 = vector.broadcast %434 : f32 to vector<8x128xf32>
    %436 = arith.mulf %435, %331 : vector<8x128xf32>
    %437 = arith.addf %425, %436 : vector<8x128xf32>
    %c79 = arith.constant 79 : index
    %438 = memref.load %arg3[%c79] : memref<162xf32, #tpu.memory_space<smem>>
    %439 = vector.broadcast %438 : f32 to vector<8x128xf32>
    %440 = arith.mulf %439, %331 : vector<8x128xf32>
    %441 = arith.addf %429, %440 : vector<8x128xf32>
    %c133 = arith.constant 133 : index
    %442 = memref.load %arg3[%c133] : memref<162xf32, #tpu.memory_space<smem>>
    %443 = vector.broadcast %442 : f32 to vector<8x128xf32>
    %444 = arith.mulf %443, %331 : vector<8x128xf32>
    %445 = arith.addf %433, %444 : vector<8x128xf32>
    %c26 = arith.constant 26 : index
    %446 = memref.load %arg3[%c26] : memref<162xf32, #tpu.memory_space<smem>>
    %447 = vector.broadcast %446 : f32 to vector<8x128xf32>
    %448 = arith.mulf %447, %421 : vector<8x128xf32>
    %449 = arith.addf %437, %448 : vector<8x128xf32>
    %c80 = arith.constant 80 : index
    %450 = memref.load %arg3[%c80] : memref<162xf32, #tpu.memory_space<smem>>
    %451 = vector.broadcast %450 : f32 to vector<8x128xf32>
    %452 = arith.mulf %451, %421 : vector<8x128xf32>
    %453 = arith.addf %441, %452 : vector<8x128xf32>
    %c134 = arith.constant 134 : index
    %454 = memref.load %arg3[%c134] : memref<162xf32, #tpu.memory_space<smem>>
    %455 = vector.broadcast %454 : f32 to vector<8x128xf32>
    %456 = arith.mulf %455, %421 : vector<8x128xf32>
    %457 = arith.addf %445, %456 : vector<8x128xf32>
    %c0_77 = arith.constant 0 : index
    %c3_78 = arith.constant 3 : index
    %c0_79 = arith.constant 0 : index
    %c0_80 = arith.constant 0 : index
    %458 = vector.load %arg1[%c0_77, %c3_78, %c0_79, %c0_80] : memref<1x6x8x128xf32, #tpu.memory_space<vmem>>, vector<1x1x8x128xf32>
    %459 = vector.shape_cast %458 : vector<1x1x8x128xf32> to vector<8x128xf32>
    %c32_i32_81 = arith.constant 32 : i32
    %460 = tpu.dynamic_rotate %459 by %c32_i32_81 dim 1 : vector<8x128xf32>, i32 -> vector<8x128xf32>
    %c1_i32_82 = arith.constant 1 : i32
    %461 = tpu.dynamic_rotate %460 by %c1_i32_82 dim 0 : vector<8x128xf32>, i32 -> vector<8x128xf32>
    %462 = arith.select %37, %460, %461 : vector<8x128xi1>, vector<8x128xf32>
    %cst_83 = arith.constant 0.000000e+00 : f32
    %463 = vector.broadcast %cst_83 : f32 to vector<8x128xf32>
    %464 = arith.select %29, %462, %463 : vector<8x128xi1>, vector<8x128xf32>
    %c96_i32_84 = arith.constant 96 : i32
    %465 = tpu.dynamic_rotate %459 by %c96_i32_84 dim 1 : vector<8x128xf32>, i32 -> vector<8x128xf32>
    %c7_i32_85 = arith.constant 7 : i32
    %466 = tpu.dynamic_rotate %465 by %c7_i32_85 dim 0 : vector<8x128xf32>, i32 -> vector<8x128xf32>
    %467 = arith.select %35, %465, %466 : vector<8x128xi1>, vector<8x128xf32>
    %cst_86 = arith.constant 0.000000e+00 : f32
    %468 = vector.broadcast %cst_86 : f32 to vector<8x128xf32>
    %469 = arith.select %23, %467, %468 : vector<8x128xi1>, vector<8x128xf32>
    %c1_i32_87 = arith.constant 1 : i32
    %470 = tpu.dynamic_rotate %464 by %c1_i32_87 dim 1 : vector<8x128xf32>, i32 -> vector<8x128xf32>
    %cst_88 = arith.constant 0.000000e+00 : f32
    %471 = vector.broadcast %cst_88 : f32 to vector<8x128xf32>
    %472 = arith.select %33, %470, %471 : vector<8x128xi1>, vector<8x128xf32>
    %c127_i32_89 = arith.constant 127 : i32
    %473 = tpu.dynamic_rotate %464 by %c127_i32_89 dim 1 : vector<8x128xf32>, i32 -> vector<8x128xf32>
    %cst_90 = arith.constant 0.000000e+00 : f32
    %474 = vector.broadcast %cst_90 : f32 to vector<8x128xf32>
    %475 = arith.select %31, %473, %474 : vector<8x128xi1>, vector<8x128xf32>
    %c27 = arith.constant 27 : index
    %476 = memref.load %arg3[%c27] : memref<162xf32, #tpu.memory_space<smem>>
    %477 = vector.broadcast %476 : f32 to vector<8x128xf32>
    %478 = arith.mulf %477, %472 : vector<8x128xf32>
    %479 = arith.addf %449, %478 : vector<8x128xf32>
    %c81 = arith.constant 81 : index
    %480 = memref.load %arg3[%c81] : memref<162xf32, #tpu.memory_space<smem>>
    %481 = vector.broadcast %480 : f32 to vector<8x128xf32>
    %482 = arith.mulf %481, %472 : vector<8x128xf32>
    %483 = arith.addf %453, %482 : vector<8x128xf32>
    %c135 = arith.constant 135 : index
    %484 = memref.load %arg3[%c135] : memref<162xf32, #tpu.memory_space<smem>>
    %485 = vector.broadcast %484 : f32 to vector<8x128xf32>
    %486 = arith.mulf %485, %472 : vector<8x128xf32>
    %487 = arith.addf %457, %486 : vector<8x128xf32>
    %c28 = arith.constant 28 : index
    %488 = memref.load %arg3[%c28] : memref<162xf32, #tpu.memory_space<smem>>
    %489 = vector.broadcast %488 : f32 to vector<8x128xf32>
    %490 = arith.mulf %489, %464 : vector<8x128xf32>
    %491 = arith.addf %479, %490 : vector<8x128xf32>
    %c82 = arith.constant 82 : index
    %492 = memref.load %arg3[%c82] : memref<162xf32, #tpu.memory_space<smem>>
    %493 = vector.broadcast %492 : f32 to vector<8x128xf32>
    %494 = arith.mulf %493, %464 : vector<8x128xf32>
    %495 = arith.addf %483, %494 : vector<8x128xf32>
    %c136 = arith.constant 136 : index
    %496 = memref.load %arg3[%c136] : memref<162xf32, #tpu.memory_space<smem>>
    %497 = vector.broadcast %496 : f32 to vector<8x128xf32>
    %498 = arith.mulf %497, %464 : vector<8x128xf32>
    %499 = arith.addf %487, %498 : vector<8x128xf32>
    %c29 = arith.constant 29 : index
    %500 = memref.load %arg3[%c29] : memref<162xf32, #tpu.memory_space<smem>>
    %501 = vector.broadcast %500 : f32 to vector<8x128xf32>
    %502 = arith.mulf %501, %475 : vector<8x128xf32>
    %503 = arith.addf %491, %502 : vector<8x128xf32>
    %c83 = arith.constant 83 : index
    %504 = memref.load %arg3[%c83] : memref<162xf32, #tpu.memory_space<smem>>
    %505 = vector.broadcast %504 : f32 to vector<8x128xf32>
    %506 = arith.mulf %505, %475 : vector<8x128xf32>
    %507 = arith.addf %495, %506 : vector<8x128xf32>
    %c137 = arith.constant 137 : index
    %508 = memref.load %arg3[%c137] : memref<162xf32, #tpu.memory_space<smem>>
    %509 = vector.broadcast %508 : f32 to vector<8x128xf32>
    %510 = arith.mulf %509, %475 : vector<8x128xf32>
    %511 = arith.addf %499, %510 : vector<8x128xf32>
    %c1_i32_91 = arith.constant 1 : i32
    %512 = tpu.dynamic_rotate %459 by %c1_i32_91 dim 1 : vector<8x128xf32>, i32 -> vector<8x128xf32>
    %cst_92 = arith.constant 0.000000e+00 : f32
    %513 = vector.broadcast %cst_92 : f32 to vector<8x128xf32>
    %514 = arith.select %33, %512, %513 : vector<8x128xi1>, vector<8x128xf32>
    %c127_i32_93 = arith.constant 127 : i32
    %515 = tpu.dynamic_rotate %459 by %c127_i32_93 dim 1 : vector<8x128xf32>, i32 -> vector<8x128xf32>
    %cst_94 = arith.constant 0.000000e+00 : f32
    %516 = vector.broadcast %cst_94 : f32 to vector<8x128xf32>
    %517 = arith.select %31, %515, %516 : vector<8x128xi1>, vector<8x128xf32>
    %c30 = arith.constant 30 : index
    %518 = memref.load %arg3[%c30] : memref<162xf32, #tpu.memory_space<smem>>
    %519 = vector.broadcast %518 : f32 to vector<8x128xf32>
    %520 = arith.mulf %519, %514 : vector<8x128xf32>
    %521 = arith.addf %503, %520 : vector<8x128xf32>
    %c84 = arith.constant 84 : index
    %522 = memref.load %arg3[%c84] : memref<162xf32, #tpu.memory_space<smem>>
    %523 = vector.broadcast %522 : f32 to vector<8x128xf32>
    %524 = arith.mulf %523, %514 : vector<8x128xf32>
    %525 = arith.addf %507, %524 : vector<8x128xf32>
    %c138 = arith.constant 138 : index
    %526 = memref.load %arg3[%c138] : memref<162xf32, #tpu.memory_space<smem>>
    %527 = vector.broadcast %526 : f32 to vector<8x128xf32>
    %528 = arith.mulf %527, %514 : vector<8x128xf32>
    %529 = arith.addf %511, %528 : vector<8x128xf32>
    %c31 = arith.constant 31 : index
    %530 = memref.load %arg3[%c31] : memref<162xf32, #tpu.memory_space<smem>>
    %531 = vector.broadcast %530 : f32 to vector<8x128xf32>
    %532 = arith.mulf %531, %459 : vector<8x128xf32>
    %533 = arith.addf %521, %532 : vector<8x128xf32>
    %c85 = arith.constant 85 : index
    %534 = memref.load %arg3[%c85] : memref<162xf32, #tpu.memory_space<smem>>
    %535 = vector.broadcast %534 : f32 to vector<8x128xf32>
    %536 = arith.mulf %535, %459 : vector<8x128xf32>
    %537 = arith.addf %525, %536 : vector<8x128xf32>
    %c139 = arith.constant 139 : index
    %538 = memref.load %arg3[%c139] : memref<162xf32, #tpu.memory_space<smem>>
    %539 = vector.broadcast %538 : f32 to vector<8x128xf32>
    %540 = arith.mulf %539, %459 : vector<8x128xf32>
    %541 = arith.addf %529, %540 : vector<8x128xf32>
    %c32 = arith.constant 32 : index
    %542 = memref.load %arg3[%c32] : memref<162xf32, #tpu.memory_space<smem>>
    %543 = vector.broadcast %542 : f32 to vector<8x128xf32>
    %544 = arith.mulf %543, %517 : vector<8x128xf32>
    %545 = arith.addf %533, %544 : vector<8x128xf32>
    %c86 = arith.constant 86 : index
    %546 = memref.load %arg3[%c86] : memref<162xf32, #tpu.memory_space<smem>>
    %547 = vector.broadcast %546 : f32 to vector<8x128xf32>
    %548 = arith.mulf %547, %517 : vector<8x128xf32>
    %549 = arith.addf %537, %548 : vector<8x128xf32>
    %c140 = arith.constant 140 : index
    %550 = memref.load %arg3[%c140] : memref<162xf32, #tpu.memory_space<smem>>
    %551 = vector.broadcast %550 : f32 to vector<8x128xf32>
    %552 = arith.mulf %551, %517 : vector<8x128xf32>
    %553 = arith.addf %541, %552 : vector<8x128xf32>
    %c1_i32_95 = arith.constant 1 : i32
    %554 = tpu.dynamic_rotate %469 by %c1_i32_95 dim 1 : vector<8x128xf32>, i32 -> vector<8x128xf32>
    %cst_96 = arith.constant 0.000000e+00 : f32
    %555 = vector.broadcast %cst_96 : f32 to vector<8x128xf32>
    %556 = arith.select %33, %554, %555 : vector<8x128xi1>, vector<8x128xf32>
    %c127_i32_97 = arith.constant 127 : i32
    %557 = tpu.dynamic_rotate %469 by %c127_i32_97 dim 1 : vector<8x128xf32>, i32 -> vector<8x128xf32>
    %cst_98 = arith.constant 0.000000e+00 : f32
    %558 = vector.broadcast %cst_98 : f32 to vector<8x128xf32>
    %559 = arith.select %31, %557, %558 : vector<8x128xi1>, vector<8x128xf32>
    %c33 = arith.constant 33 : index
    %560 = memref.load %arg3[%c33] : memref<162xf32, #tpu.memory_space<smem>>
    %561 = vector.broadcast %560 : f32 to vector<8x128xf32>
    %562 = arith.mulf %561, %556 : vector<8x128xf32>
    %563 = arith.addf %545, %562 : vector<8x128xf32>
    %c87 = arith.constant 87 : index
    %564 = memref.load %arg3[%c87] : memref<162xf32, #tpu.memory_space<smem>>
    %565 = vector.broadcast %564 : f32 to vector<8x128xf32>
    %566 = arith.mulf %565, %556 : vector<8x128xf32>
    %567 = arith.addf %549, %566 : vector<8x128xf32>
    %c141 = arith.constant 141 : index
    %568 = memref.load %arg3[%c141] : memref<162xf32, #tpu.memory_space<smem>>
    %569 = vector.broadcast %568 : f32 to vector<8x128xf32>
    %570 = arith.mulf %569, %556 : vector<8x128xf32>
    %571 = arith.addf %553, %570 : vector<8x128xf32>
    %c34 = arith.constant 34 : index
    %572 = memref.load %arg3[%c34] : memref<162xf32, #tpu.memory_space<smem>>
    %573 = vector.broadcast %572 : f32 to vector<8x128xf32>
    %574 = arith.mulf %573, %469 : vector<8x128xf32>
    %575 = arith.addf %563, %574 : vector<8x128xf32>
    %c88 = arith.constant 88 : index
    %576 = memref.load %arg3[%c88] : memref<162xf32, #tpu.memory_space<smem>>
    %577 = vector.broadcast %576 : f32 to vector<8x128xf32>
    %578 = arith.mulf %577, %469 : vector<8x128xf32>
    %579 = arith.addf %567, %578 : vector<8x128xf32>
    %c142 = arith.constant 142 : index
    %580 = memref.load %arg3[%c142] : memref<162xf32, #tpu.memory_space<smem>>
    %581 = vector.broadcast %580 : f32 to vector<8x128xf32>
    %582 = arith.mulf %581, %469 : vector<8x128xf32>
    %583 = arith.addf %571, %582 : vector<8x128xf32>
    %c35 = arith.constant 35 : index
    %584 = memref.load %arg3[%c35] : memref<162xf32, #tpu.memory_space<smem>>
    %585 = vector.broadcast %584 : f32 to vector<8x128xf32>
    %586 = arith.mulf %585, %559 : vector<8x128xf32>
    %587 = arith.addf %575, %586 : vector<8x128xf32>
    %c89 = arith.constant 89 : index
    %588 = memref.load %arg3[%c89] : memref<162xf32, #tpu.memory_space<smem>>
    %589 = vector.broadcast %588 : f32 to vector<8x128xf32>
    %590 = arith.mulf %589, %559 : vector<8x128xf32>
    %591 = arith.addf %579, %590 : vector<8x128xf32>
    %c143 = arith.constant 143 : index
    %592 = memref.load %arg3[%c143] : memref<162xf32, #tpu.memory_space<smem>>
    %593 = vector.broadcast %592 : f32 to vector<8x128xf32>
    %594 = arith.mulf %593, %559 : vector<8x128xf32>
    %595 = arith.addf %583, %594 : vector<8x128xf32>
    %c0_99 = arith.constant 0 : index
    %c4_100 = arith.constant 4 : index
    %c0_101 = arith.constant 0 : index
    %c0_102 = arith.constant 0 : index
    %596 = vector.load %arg1[%c0_99, %c4_100, %c0_101, %c0_102] : memref<1x6x8x128xf32, #tpu.memory_space<vmem>>, vector<1x1x8x128xf32>
    %597 = vector.shape_cast %596 : vector<1x1x8x128xf32> to vector<8x128xf32>
    %c32_i32_103 = arith.constant 32 : i32
    %598 = tpu.dynamic_rotate %597 by %c32_i32_103 dim 1 : vector<8x128xf32>, i32 -> vector<8x128xf32>
    %c1_i32_104 = arith.constant 1 : i32
    %599 = tpu.dynamic_rotate %598 by %c1_i32_104 dim 0 : vector<8x128xf32>, i32 -> vector<8x128xf32>
    %600 = arith.select %37, %598, %599 : vector<8x128xi1>, vector<8x128xf32>
    %cst_105 = arith.constant 0.000000e+00 : f32
    %601 = vector.broadcast %cst_105 : f32 to vector<8x128xf32>
    %602 = arith.select %29, %600, %601 : vector<8x128xi1>, vector<8x128xf32>
    %c96_i32_106 = arith.constant 96 : i32
    %603 = tpu.dynamic_rotate %597 by %c96_i32_106 dim 1 : vector<8x128xf32>, i32 -> vector<8x128xf32>
    %c7_i32_107 = arith.constant 7 : i32
    %604 = tpu.dynamic_rotate %603 by %c7_i32_107 dim 0 : vector<8x128xf32>, i32 -> vector<8x128xf32>
    %605 = arith.select %35, %603, %604 : vector<8x128xi1>, vector<8x128xf32>
    %cst_108 = arith.constant 0.000000e+00 : f32
    %606 = vector.broadcast %cst_108 : f32 to vector<8x128xf32>
    %607 = arith.select %23, %605, %606 : vector<8x128xi1>, vector<8x128xf32>
    %c1_i32_109 = arith.constant 1 : i32
    %608 = tpu.dynamic_rotate %602 by %c1_i32_109 dim 1 : vector<8x128xf32>, i32 -> vector<8x128xf32>
    %cst_110 = arith.constant 0.000000e+00 : f32
    %609 = vector.broadcast %cst_110 : f32 to vector<8x128xf32>
    %610 = arith.select %33, %608, %609 : vector<8x128xi1>, vector<8x128xf32>
    %c127_i32_111 = arith.constant 127 : i32
    %611 = tpu.dynamic_rotate %602 by %c127_i32_111 dim 1 : vector<8x128xf32>, i32 -> vector<8x128xf32>
    %cst_112 = arith.constant 0.000000e+00 : f32
    %612 = vector.broadcast %cst_112 : f32 to vector<8x128xf32>
    %613 = arith.select %31, %611, %612 : vector<8x128xi1>, vector<8x128xf32>
    %c36 = arith.constant 36 : index
    %614 = memref.load %arg3[%c36] : memref<162xf32, #tpu.memory_space<smem>>
    %615 = vector.broadcast %614 : f32 to vector<8x128xf32>
    %616 = arith.mulf %615, %610 : vector<8x128xf32>
    %617 = arith.addf %587, %616 : vector<8x128xf32>
    %c90 = arith.constant 90 : index
    %618 = memref.load %arg3[%c90] : memref<162xf32, #tpu.memory_space<smem>>
    %619 = vector.broadcast %618 : f32 to vector<8x128xf32>
    %620 = arith.mulf %619, %610 : vector<8x128xf32>
    %621 = arith.addf %591, %620 : vector<8x128xf32>
    %c144 = arith.constant 144 : index
    %622 = memref.load %arg3[%c144] : memref<162xf32, #tpu.memory_space<smem>>
    %623 = vector.broadcast %622 : f32 to vector<8x128xf32>
    %624 = arith.mulf %623, %610 : vector<8x128xf32>
    %625 = arith.addf %595, %624 : vector<8x128xf32>
    %c37 = arith.constant 37 : index
    %626 = memref.load %arg3[%c37] : memref<162xf32, #tpu.memory_space<smem>>
    %627 = vector.broadcast %626 : f32 to vector<8x128xf32>
    %628 = arith.mulf %627, %602 : vector<8x128xf32>
    %629 = arith.addf %617, %628 : vector<8x128xf32>
    %c91 = arith.constant 91 : index
    %630 = memref.load %arg3[%c91] : memref<162xf32, #tpu.memory_space<smem>>
    %631 = vector.broadcast %630 : f32 to vector<8x128xf32>
    %632 = arith.mulf %631, %602 : vector<8x128xf32>
    %633 = arith.addf %621, %632 : vector<8x128xf32>
    %c145 = arith.constant 145 : index
    %634 = memref.load %arg3[%c145] : memref<162xf32, #tpu.memory_space<smem>>
    %635 = vector.broadcast %634 : f32 to vector<8x128xf32>
    %636 = arith.mulf %635, %602 : vector<8x128xf32>
    %637 = arith.addf %625, %636 : vector<8x128xf32>
    %c38 = arith.constant 38 : index
    %638 = memref.load %arg3[%c38] : memref<162xf32, #tpu.memory_space<smem>>
    %639 = vector.broadcast %638 : f32 to vector<8x128xf32>
    %640 = arith.mulf %639, %613 : vector<8x128xf32>
    %641 = arith.addf %629, %640 : vector<8x128xf32>
    %c92 = arith.constant 92 : index
    %642 = memref.load %arg3[%c92] : memref<162xf32, #tpu.memory_space<smem>>
    %643 = vector.broadcast %642 : f32 to vector<8x128xf32>
    %644 = arith.mulf %643, %613 : vector<8x128xf32>
    %645 = arith.addf %633, %644 : vector<8x128xf32>
    %c146 = arith.constant 146 : index
    %646 = memref.load %arg3[%c146] : memref<162xf32, #tpu.memory_space<smem>>
    %647 = vector.broadcast %646 : f32 to vector<8x128xf32>
    %648 = arith.mulf %647, %613 : vector<8x128xf32>
    %649 = arith.addf %637, %648 : vector<8x128xf32>
    %c1_i32_113 = arith.constant 1 : i32
    %650 = tpu.dynamic_rotate %597 by %c1_i32_113 dim 1 : vector<8x128xf32>, i32 -> vector<8x128xf32>
    %cst_114 = arith.constant 0.000000e+00 : f32
    %651 = vector.broadcast %cst_114 : f32 to vector<8x128xf32>
    %652 = arith.select %33, %650, %651 : vector<8x128xi1>, vector<8x128xf32>
    %c127_i32_115 = arith.constant 127 : i32
    %653 = tpu.dynamic_rotate %597 by %c127_i32_115 dim 1 : vector<8x128xf32>, i32 -> vector<8x128xf32>
    %cst_116 = arith.constant 0.000000e+00 : f32
    %654 = vector.broadcast %cst_116 : f32 to vector<8x128xf32>
    %655 = arith.select %31, %653, %654 : vector<8x128xi1>, vector<8x128xf32>
    %c39 = arith.constant 39 : index
    %656 = memref.load %arg3[%c39] : memref<162xf32, #tpu.memory_space<smem>>
    %657 = vector.broadcast %656 : f32 to vector<8x128xf32>
    %658 = arith.mulf %657, %652 : vector<8x128xf32>
    %659 = arith.addf %641, %658 : vector<8x128xf32>
    %c93 = arith.constant 93 : index
    %660 = memref.load %arg3[%c93] : memref<162xf32, #tpu.memory_space<smem>>
    %661 = vector.broadcast %660 : f32 to vector<8x128xf32>
    %662 = arith.mulf %661, %652 : vector<8x128xf32>
    %663 = arith.addf %645, %662 : vector<8x128xf32>
    %c147 = arith.constant 147 : index
    %664 = memref.load %arg3[%c147] : memref<162xf32, #tpu.memory_space<smem>>
    %665 = vector.broadcast %664 : f32 to vector<8x128xf32>
    %666 = arith.mulf %665, %652 : vector<8x128xf32>
    %667 = arith.addf %649, %666 : vector<8x128xf32>
    %c40 = arith.constant 40 : index
    %668 = memref.load %arg3[%c40] : memref<162xf32, #tpu.memory_space<smem>>
    %669 = vector.broadcast %668 : f32 to vector<8x128xf32>
    %670 = arith.mulf %669, %597 : vector<8x128xf32>
    %671 = arith.addf %659, %670 : vector<8x128xf32>
    %c94 = arith.constant 94 : index
    %672 = memref.load %arg3[%c94] : memref<162xf32, #tpu.memory_space<smem>>
    %673 = vector.broadcast %672 : f32 to vector<8x128xf32>
    %674 = arith.mulf %673, %597 : vector<8x128xf32>
    %675 = arith.addf %663, %674 : vector<8x128xf32>
    %c148 = arith.constant 148 : index
    %676 = memref.load %arg3[%c148] : memref<162xf32, #tpu.memory_space<smem>>
    %677 = vector.broadcast %676 : f32 to vector<8x128xf32>
    %678 = arith.mulf %677, %597 : vector<8x128xf32>
    %679 = arith.addf %667, %678 : vector<8x128xf32>
    %c41 = arith.constant 41 : index
    %680 = memref.load %arg3[%c41] : memref<162xf32, #tpu.memory_space<smem>>
    %681 = vector.broadcast %680 : f32 to vector<8x128xf32>
    %682 = arith.mulf %681, %655 : vector<8x128xf32>
    %683 = arith.addf %671, %682 : vector<8x128xf32>
    %c95 = arith.constant 95 : index
    %684 = memref.load %arg3[%c95] : memref<162xf32, #tpu.memory_space<smem>>
    %685 = vector.broadcast %684 : f32 to vector<8x128xf32>
    %686 = arith.mulf %685, %655 : vector<8x128xf32>
    %687 = arith.addf %675, %686 : vector<8x128xf32>
    %c149 = arith.constant 149 : index
    %688 = memref.load %arg3[%c149] : memref<162xf32, #tpu.memory_space<smem>>
    %689 = vector.broadcast %688 : f32 to vector<8x128xf32>
    %690 = arith.mulf %689, %655 : vector<8x128xf32>
    %691 = arith.addf %679, %690 : vector<8x128xf32>
    %c1_i32_117 = arith.constant 1 : i32
    %692 = tpu.dynamic_rotate %607 by %c1_i32_117 dim 1 : vector<8x128xf32>, i32 -> vector<8x128xf32>
    %cst_118 = arith.constant 0.000000e+00 : f32
    %693 = vector.broadcast %cst_118 : f32 to vector<8x128xf32>
    %694 = arith.select %33, %692, %693 : vector<8x128xi1>, vector<8x128xf32>
    %c127_i32_119 = arith.constant 127 : i32
    %695 = tpu.dynamic_rotate %607 by %c127_i32_119 dim 1 : vector<8x128xf32>, i32 -> vector<8x128xf32>
    %cst_120 = arith.constant 0.000000e+00 : f32
    %696 = vector.broadcast %cst_120 : f32 to vector<8x128xf32>
    %697 = arith.select %31, %695, %696 : vector<8x128xi1>, vector<8x128xf32>
    %c42 = arith.constant 42 : index
    %698 = memref.load %arg3[%c42] : memref<162xf32, #tpu.memory_space<smem>>
    %699 = vector.broadcast %698 : f32 to vector<8x128xf32>
    %700 = arith.mulf %699, %694 : vector<8x128xf32>
    %701 = arith.addf %683, %700 : vector<8x128xf32>
    %c96 = arith.constant 96 : index
    %702 = memref.load %arg3[%c96] : memref<162xf32, #tpu.memory_space<smem>>
    %703 = vector.broadcast %702 : f32 to vector<8x128xf32>
    %704 = arith.mulf %703, %694 : vector<8x128xf32>
    %705 = arith.addf %687, %704 : vector<8x128xf32>
    %c150 = arith.constant 150 : index
    %706 = memref.load %arg3[%c150] : memref<162xf32, #tpu.memory_space<smem>>
    %707 = vector.broadcast %706 : f32 to vector<8x128xf32>
    %708 = arith.mulf %707, %694 : vector<8x128xf32>
    %709 = arith.addf %691, %708 : vector<8x128xf32>
    %c43 = arith.constant 43 : index
    %710 = memref.load %arg3[%c43] : memref<162xf32, #tpu.memory_space<smem>>
    %711 = vector.broadcast %710 : f32 to vector<8x128xf32>
    %712 = arith.mulf %711, %607 : vector<8x128xf32>
    %713 = arith.addf %701, %712 : vector<8x128xf32>
    %c97 = arith.constant 97 : index
    %714 = memref.load %arg3[%c97] : memref<162xf32, #tpu.memory_space<smem>>
    %715 = vector.broadcast %714 : f32 to vector<8x128xf32>
    %716 = arith.mulf %715, %607 : vector<8x128xf32>
    %717 = arith.addf %705, %716 : vector<8x128xf32>
    %c151 = arith.constant 151 : index
    %718 = memref.load %arg3[%c151] : memref<162xf32, #tpu.memory_space<smem>>
    %719 = vector.broadcast %718 : f32 to vector<8x128xf32>
    %720 = arith.mulf %719, %607 : vector<8x128xf32>
    %721 = arith.addf %709, %720 : vector<8x128xf32>
    %c44 = arith.constant 44 : index
    %722 = memref.load %arg3[%c44] : memref<162xf32, #tpu.memory_space<smem>>
    %723 = vector.broadcast %722 : f32 to vector<8x128xf32>
    %724 = arith.mulf %723, %697 : vector<8x128xf32>
    %725 = arith.addf %713, %724 : vector<8x128xf32>
    %c98 = arith.constant 98 : index
    %726 = memref.load %arg3[%c98] : memref<162xf32, #tpu.memory_space<smem>>
    %727 = vector.broadcast %726 : f32 to vector<8x128xf32>
    %728 = arith.mulf %727, %697 : vector<8x128xf32>
    %729 = arith.addf %717, %728 : vector<8x128xf32>
    %c152 = arith.constant 152 : index
    %730 = memref.load %arg3[%c152] : memref<162xf32, #tpu.memory_space<smem>>
    %731 = vector.broadcast %730 : f32 to vector<8x128xf32>
    %732 = arith.mulf %731, %697 : vector<8x128xf32>
    %733 = arith.addf %721, %732 : vector<8x128xf32>
    %c0_121 = arith.constant 0 : index
    %c5_122 = arith.constant 5 : index
    %c0_123 = arith.constant 0 : index
    %c0_124 = arith.constant 0 : index
    %734 = vector.load %arg1[%c0_121, %c5_122, %c0_123, %c0_124] : memref<1x6x8x128xf32, #tpu.memory_space<vmem>>, vector<1x1x8x128xf32>
    %735 = vector.shape_cast %734 : vector<1x1x8x128xf32> to vector<8x128xf32>
    %c32_i32_125 = arith.constant 32 : i32
    %736 = tpu.dynamic_rotate %735 by %c32_i32_125 dim 1 : vector<8x128xf32>, i32 -> vector<8x128xf32>
    %c1_i32_126 = arith.constant 1 : i32
    %737 = tpu.dynamic_rotate %736 by %c1_i32_126 dim 0 : vector<8x128xf32>, i32 -> vector<8x128xf32>
    %738 = arith.select %37, %736, %737 : vector<8x128xi1>, vector<8x128xf32>
    %cst_127 = arith.constant 0.000000e+00 : f32
    %739 = vector.broadcast %cst_127 : f32 to vector<8x128xf32>
    %740 = arith.select %29, %738, %739 : vector<8x128xi1>, vector<8x128xf32>
    %c96_i32_128 = arith.constant 96 : i32
    %741 = tpu.dynamic_rotate %735 by %c96_i32_128 dim 1 : vector<8x128xf32>, i32 -> vector<8x128xf32>
    %c7_i32_129 = arith.constant 7 : i32
    %742 = tpu.dynamic_rotate %741 by %c7_i32_129 dim 0 : vector<8x128xf32>, i32 -> vector<8x128xf32>
    %743 = arith.select %35, %741, %742 : vector<8x128xi1>, vector<8x128xf32>
    %cst_130 = arith.constant 0.000000e+00 : f32
    %744 = vector.broadcast %cst_130 : f32 to vector<8x128xf32>
    %745 = arith.select %23, %743, %744 : vector<8x128xi1>, vector<8x128xf32>
    %c1_i32_131 = arith.constant 1 : i32
    %746 = tpu.dynamic_rotate %740 by %c1_i32_131 dim 1 : vector<8x128xf32>, i32 -> vector<8x128xf32>
    %cst_132 = arith.constant 0.000000e+00 : f32
    %747 = vector.broadcast %cst_132 : f32 to vector<8x128xf32>
    %748 = arith.select %33, %746, %747 : vector<8x128xi1>, vector<8x128xf32>
    %c127_i32_133 = arith.constant 127 : i32
    %749 = tpu.dynamic_rotate %740 by %c127_i32_133 dim 1 : vector<8x128xf32>, i32 -> vector<8x128xf32>
    %cst_134 = arith.constant 0.000000e+00 : f32
    %750 = vector.broadcast %cst_134 : f32 to vector<8x128xf32>
    %751 = arith.select %31, %749, %750 : vector<8x128xi1>, vector<8x128xf32>
    %c45 = arith.constant 45 : index
    %752 = memref.load %arg3[%c45] : memref<162xf32, #tpu.memory_space<smem>>
    %753 = vector.broadcast %752 : f32 to vector<8x128xf32>
    %754 = arith.mulf %753, %748 : vector<8x128xf32>
    %755 = arith.addf %725, %754 : vector<8x128xf32>
    %c99 = arith.constant 99 : index
    %756 = memref.load %arg3[%c99] : memref<162xf32, #tpu.memory_space<smem>>
    %757 = vector.broadcast %756 : f32 to vector<8x128xf32>
    %758 = arith.mulf %757, %748 : vector<8x128xf32>
    %759 = arith.addf %729, %758 : vector<8x128xf32>
    %c153 = arith.constant 153 : index
    %760 = memref.load %arg3[%c153] : memref<162xf32, #tpu.memory_space<smem>>
    %761 = vector.broadcast %760 : f32 to vector<8x128xf32>
    %762 = arith.mulf %761, %748 : vector<8x128xf32>
    %763 = arith.addf %733, %762 : vector<8x128xf32>
    %c46 = arith.constant 46 : index
    %764 = memref.load %arg3[%c46] : memref<162xf32, #tpu.memory_space<smem>>
    %765 = vector.broadcast %764 : f32 to vector<8x128xf32>
    %766 = arith.mulf %765, %740 : vector<8x128xf32>
    %767 = arith.addf %755, %766 : vector<8x128xf32>
    %c100 = arith.constant 100 : index
    %768 = memref.load %arg3[%c100] : memref<162xf32, #tpu.memory_space<smem>>
    %769 = vector.broadcast %768 : f32 to vector<8x128xf32>
    %770 = arith.mulf %769, %740 : vector<8x128xf32>
    %771 = arith.addf %759, %770 : vector<8x128xf32>
    %c154 = arith.constant 154 : index
    %772 = memref.load %arg3[%c154] : memref<162xf32, #tpu.memory_space<smem>>
    %773 = vector.broadcast %772 : f32 to vector<8x128xf32>
    %774 = arith.mulf %773, %740 : vector<8x128xf32>
    %775 = arith.addf %763, %774 : vector<8x128xf32>
    %c47 = arith.constant 47 : index
    %776 = memref.load %arg3[%c47] : memref<162xf32, #tpu.memory_space<smem>>
    %777 = vector.broadcast %776 : f32 to vector<8x128xf32>
    %778 = arith.mulf %777, %751 : vector<8x128xf32>
    %779 = arith.addf %767, %778 : vector<8x128xf32>
    %c101 = arith.constant 101 : index
    %780 = memref.load %arg3[%c101] : memref<162xf32, #tpu.memory_space<smem>>
    %781 = vector.broadcast %780 : f32 to vector<8x128xf32>
    %782 = arith.mulf %781, %751 : vector<8x128xf32>
    %783 = arith.addf %771, %782 : vector<8x128xf32>
    %c155 = arith.constant 155 : index
    %784 = memref.load %arg3[%c155] : memref<162xf32, #tpu.memory_space<smem>>
    %785 = vector.broadcast %784 : f32 to vector<8x128xf32>
    %786 = arith.mulf %785, %751 : vector<8x128xf32>
    %787 = arith.addf %775, %786 : vector<8x128xf32>
    %c1_i32_135 = arith.constant 1 : i32
    %788 = tpu.dynamic_rotate %735 by %c1_i32_135 dim 1 : vector<8x128xf32>, i32 -> vector<8x128xf32>
    %cst_136 = arith.constant 0.000000e+00 : f32
    %789 = vector.broadcast %cst_136 : f32 to vector<8x128xf32>
    %790 = arith.select %33, %788, %789 : vector<8x128xi1>, vector<8x128xf32>
    %c127_i32_137 = arith.constant 127 : i32
    %791 = tpu.dynamic_rotate %735 by %c127_i32_137 dim 1 : vector<8x128xf32>, i32 -> vector<8x128xf32>
    %cst_138 = arith.constant 0.000000e+00 : f32
    %792 = vector.broadcast %cst_138 : f32 to vector<8x128xf32>
    %793 = arith.select %31, %791, %792 : vector<8x128xi1>, vector<8x128xf32>
    %c48 = arith.constant 48 : index
    %794 = memref.load %arg3[%c48] : memref<162xf32, #tpu.memory_space<smem>>
    %795 = vector.broadcast %794 : f32 to vector<8x128xf32>
    %796 = arith.mulf %795, %790 : vector<8x128xf32>
    %797 = arith.addf %779, %796 : vector<8x128xf32>
    %c102 = arith.constant 102 : index
    %798 = memref.load %arg3[%c102] : memref<162xf32, #tpu.memory_space<smem>>
    %799 = vector.broadcast %798 : f32 to vector<8x128xf32>
    %800 = arith.mulf %799, %790 : vector<8x128xf32>
    %801 = arith.addf %783, %800 : vector<8x128xf32>
    %c156 = arith.constant 156 : index
    %802 = memref.load %arg3[%c156] : memref<162xf32, #tpu.memory_space<smem>>
    %803 = vector.broadcast %802 : f32 to vector<8x128xf32>
    %804 = arith.mulf %803, %790 : vector<8x128xf32>
    %805 = arith.addf %787, %804 : vector<8x128xf32>
    %c49 = arith.constant 49 : index
    %806 = memref.load %arg3[%c49] : memref<162xf32, #tpu.memory_space<smem>>
    %807 = vector.broadcast %806 : f32 to vector<8x128xf32>
    %808 = arith.mulf %807, %735 : vector<8x128xf32>
    %809 = arith.addf %797, %808 : vector<8x128xf32>
    %c103 = arith.constant 103 : index
    %810 = memref.load %arg3[%c103] : memref<162xf32, #tpu.memory_space<smem>>
    %811 = vector.broadcast %810 : f32 to vector<8x128xf32>
    %812 = arith.mulf %811, %735 : vector<8x128xf32>
    %813 = arith.addf %801, %812 : vector<8x128xf32>
    %c157 = arith.constant 157 : index
    %814 = memref.load %arg3[%c157] : memref<162xf32, #tpu.memory_space<smem>>
    %815 = vector.broadcast %814 : f32 to vector<8x128xf32>
    %816 = arith.mulf %815, %735 : vector<8x128xf32>
    %817 = arith.addf %805, %816 : vector<8x128xf32>
    %c50 = arith.constant 50 : index
    %818 = memref.load %arg3[%c50] : memref<162xf32, #tpu.memory_space<smem>>
    %819 = vector.broadcast %818 : f32 to vector<8x128xf32>
    %820 = arith.mulf %819, %793 : vector<8x128xf32>
    %821 = arith.addf %809, %820 : vector<8x128xf32>
    %c104 = arith.constant 104 : index
    %822 = memref.load %arg3[%c104] : memref<162xf32, #tpu.memory_space<smem>>
    %823 = vector.broadcast %822 : f32 to vector<8x128xf32>
    %824 = arith.mulf %823, %793 : vector<8x128xf32>
    %825 = arith.addf %813, %824 : vector<8x128xf32>
    %c158 = arith.constant 158 : index
    %826 = memref.load %arg3[%c158] : memref<162xf32, #tpu.memory_space<smem>>
    %827 = vector.broadcast %826 : f32 to vector<8x128xf32>
    %828 = arith.mulf %827, %793 : vector<8x128xf32>
    %829 = arith.addf %817, %828 : vector<8x128xf32>
    %c1_i32_139 = arith.constant 1 : i32
    %830 = tpu.dynamic_rotate %745 by %c1_i32_139 dim 1 : vector<8x128xf32>, i32 -> vector<8x128xf32>
    %cst_140 = arith.constant 0.000000e+00 : f32
    %831 = vector.broadcast %cst_140 : f32 to vector<8x128xf32>
    %832 = arith.select %33, %830, %831 : vector<8x128xi1>, vector<8x128xf32>
    %c127_i32_141 = arith.constant 127 : i32
    %833 = tpu.dynamic_rotate %745 by %c127_i32_141 dim 1 : vector<8x128xf32>, i32 -> vector<8x128xf32>
    %cst_142 = arith.constant 0.000000e+00 : f32
    %834 = vector.broadcast %cst_142 : f32 to vector<8x128xf32>
    %835 = arith.select %31, %833, %834 : vector<8x128xi1>, vector<8x128xf32>
    %c51 = arith.constant 51 : index
    %836 = memref.load %arg3[%c51] : memref<162xf32, #tpu.memory_space<smem>>
    %837 = vector.broadcast %836 : f32 to vector<8x128xf32>
    %838 = arith.mulf %837, %832 : vector<8x128xf32>
    %839 = arith.addf %821, %838 : vector<8x128xf32>
    %c105 = arith.constant 105 : index
    %840 = memref.load %arg3[%c105] : memref<162xf32, #tpu.memory_space<smem>>
    %841 = vector.broadcast %840 : f32 to vector<8x128xf32>
    %842 = arith.mulf %841, %832 : vector<8x128xf32>
    %843 = arith.addf %825, %842 : vector<8x128xf32>
    %c159 = arith.constant 159 : index
    %844 = memref.load %arg3[%c159] : memref<162xf32, #tpu.memory_space<smem>>
    %845 = vector.broadcast %844 : f32 to vector<8x128xf32>
    %846 = arith.mulf %845, %832 : vector<8x128xf32>
    %847 = arith.addf %829, %846 : vector<8x128xf32>
    %c52 = arith.constant 52 : index
    %848 = memref.load %arg3[%c52] : memref<162xf32, #tpu.memory_space<smem>>
    %849 = vector.broadcast %848 : f32 to vector<8x128xf32>
    %850 = arith.mulf %849, %745 : vector<8x128xf32>
    %851 = arith.addf %839, %850 : vector<8x128xf32>
    %c106 = arith.constant 106 : index
    %852 = memref.load %arg3[%c106] : memref<162xf32, #tpu.memory_space<smem>>
    %853 = vector.broadcast %852 : f32 to vector<8x128xf32>
    %854 = arith.mulf %853, %745 : vector<8x128xf32>
    %855 = arith.addf %843, %854 : vector<8x128xf32>
    %c160 = arith.constant 160 : index
    %856 = memref.load %arg3[%c160] : memref<162xf32, #tpu.memory_space<smem>>
    %857 = vector.broadcast %856 : f32 to vector<8x128xf32>
    %858 = arith.mulf %857, %745 : vector<8x128xf32>
    %859 = arith.addf %847, %858 : vector<8x128xf32>
    %c53 = arith.constant 53 : index
    %860 = memref.load %arg3[%c53] : memref<162xf32, #tpu.memory_space<smem>>
    %861 = vector.broadcast %860 : f32 to vector<8x128xf32>
    %862 = arith.mulf %861, %835 : vector<8x128xf32>
    %863 = arith.addf %851, %862 : vector<8x128xf32>
    %c107 = arith.constant 107 : index
    %864 = memref.load %arg3[%c107] : memref<162xf32, #tpu.memory_space<smem>>
    %865 = vector.broadcast %864 : f32 to vector<8x128xf32>
    %866 = arith.mulf %865, %835 : vector<8x128xf32>
    %867 = arith.addf %855, %866 : vector<8x128xf32>
    %c161 = arith.constant 161 : index
    %868 = memref.load %arg3[%c161] : memref<162xf32, #tpu.memory_space<smem>>
    %869 = vector.broadcast %868 : f32 to vector<8x128xf32>
    %870 = arith.mulf %869, %835 : vector<8x128xf32>
    %871 = arith.addf %859, %870 : vector<8x128xf32>
    %c0_143 = arith.constant 0 : index
    %c0_144 = arith.constant 0 : index
    %c0_145 = arith.constant 0 : index
    %c0_146 = arith.constant 0 : index
    %872 = vector.load %arg5[%c0_143, %c0_144, %c0_145, %c0_146] : memref<1x3x8x128xf32, #tpu.memory_space<vmem>>, vector<1x1x8x128xf32>
    %873 = vector.shape_cast %872 : vector<1x1x8x128xf32> to vector<8x128xf32>
    %874 = vector.shape_cast %863 : vector<8x128xf32> to vector<1x1x8x128xf32>
    tpu.vector_store %arg5[%c0_143, %c0_144, %c0_145, %c0_146], %874 {strides = array<i32>} : memref<1x3x8x128xf32, #tpu.memory_space<vmem>>, vector<1x1x8x128xf32>,
    %c0_147 = arith.constant 0 : index
    %c0_148 = arith.constant 0 : index
    %c0_149 = arith.constant 0 : index
    %c0_150 = arith.constant 0 : index
    %875 = vector.load %arg2[%c0_147, %c0_148, %c0_149, %c0_150] : memref<1x3x8x128xf32, #tpu.memory_space<vmem>>, vector<1x1x8x128xf32>
    %876 = vector.shape_cast %875 : vector<1x1x8x128xf32> to vector<8x128xf32>
    %877 = arith.addf %863, %876 : vector<8x128xf32>
    %c0_151 = arith.constant 0 : index
    %c0_152 = arith.constant 0 : index
    %c0_153 = arith.constant 0 : index
    %c0_154 = arith.constant 0 : index
    %878 = vector.load %arg6[%c0_151, %c0_152, %c0_153, %c0_154] : memref<1x3x8x128xf32, #tpu.memory_space<vmem>>, vector<1x1x8x128xf32>
    %879 = vector.shape_cast %878 : vector<1x1x8x128xf32> to vector<8x128xf32>
    %880 = vector.shape_cast %877 : vector<8x128xf32> to vector<1x1x8x128xf32>
    tpu.vector_store %arg6[%c0_151, %c0_152, %c0_153, %c0_154], %880 {strides = array<i32>} : memref<1x3x8x128xf32, #tpu.memory_space<vmem>>, vector<1x1x8x128xf32>,
    %c0_155 = arith.constant 0 : index
    %c1_156 = arith.constant 1 : index
    %c0_157 = arith.constant 0 : index
    %c0_158 = arith.constant 0 : index
    %881 = vector.load %arg5[%c0_155, %c1_156, %c0_157, %c0_158] : memref<1x3x8x128xf32, #tpu.memory_space<vmem>>, vector<1x1x8x128xf32>
    %882 = vector.shape_cast %881 : vector<1x1x8x128xf32> to vector<8x128xf32>
    %883 = vector.shape_cast %867 : vector<8x128xf32> to vector<1x1x8x128xf32>
    tpu.vector_store %arg5[%c0_155, %c1_156, %c0_157, %c0_158], %883 {strides = array<i32>} : memref<1x3x8x128xf32, #tpu.memory_space<vmem>>, vector<1x1x8x128xf32>,
    %c0_159 = arith.constant 0 : index
    %c1_160 = arith.constant 1 : index
    %c0_161 = arith.constant 0 : index
    %c0_162 = arith.constant 0 : index
    %884 = vector.load %arg2[%c0_159, %c1_160, %c0_161, %c0_162] : memref<1x3x8x128xf32, #tpu.memory_space<vmem>>, vector<1x1x8x128xf32>
    %885 = vector.shape_cast %884 : vector<1x1x8x128xf32> to vector<8x128xf32>
    %886 = arith.addf %867, %885 : vector<8x128xf32>
    %c0_163 = arith.constant 0 : index
    %c1_164 = arith.constant 1 : index
    %c0_165 = arith.constant 0 : index
    %c0_166 = arith.constant 0 : index
    %887 = vector.load %arg6[%c0_163, %c1_164, %c0_165, %c0_166] : memref<1x3x8x128xf32, #tpu.memory_space<vmem>>, vector<1x1x8x128xf32>
    %888 = vector.shape_cast %887 : vector<1x1x8x128xf32> to vector<8x128xf32>
    %889 = vector.shape_cast %886 : vector<8x128xf32> to vector<1x1x8x128xf32>
    tpu.vector_store %arg6[%c0_163, %c1_164, %c0_165, %c0_166], %889 {strides = array<i32>} : memref<1x3x8x128xf32, #tpu.memory_space<vmem>>, vector<1x1x8x128xf32>,
    %c0_167 = arith.constant 0 : index
    %c2_168 = arith.constant 2 : index
    %c0_169 = arith.constant 0 : index
    %c0_170 = arith.constant 0 : index
    %890 = vector.load %arg5[%c0_167, %c2_168, %c0_169, %c0_170] : memref<1x3x8x128xf32, #tpu.memory_space<vmem>>, vector<1x1x8x128xf32>
    %891 = vector.shape_cast %890 : vector<1x1x8x128xf32> to vector<8x128xf32>
    %892 = vector.shape_cast %871 : vector<8x128xf32> to vector<1x1x8x128xf32>
    tpu.vector_store %arg5[%c0_167, %c2_168, %c0_169, %c0_170], %892 {strides = array<i32>} : memref<1x3x8x128xf32, #tpu.memory_space<vmem>>, vector<1x1x8x128xf32>,
    %c0_171 = arith.constant 0 : index
    %c2_172 = arith.constant 2 : index
    %c0_173 = arith.constant 0 : index
    %c0_174 = arith.constant 0 : index
    %893 = vector.load %arg2[%c0_171, %c2_172, %c0_173, %c0_174] : memref<1x3x8x128xf32, #tpu.memory_space<vmem>>, vector<1x1x8x128xf32>
    %894 = vector.shape_cast %893 : vector<1x1x8x128xf32> to vector<8x128xf32>
    %895 = arith.addf %871, %894 : vector<8x128xf32>
    %c0_175 = arith.constant 0 : index
    %c2_176 = arith.constant 2 : index
    %c0_177 = arith.constant 0 : index
    %c0_178 = arith.constant 0 : index
    %896 = vector.load %arg6[%c0_175, %c2_176, %c0_177, %c0_178] : memref<1x3x8x128xf32, #tpu.memory_space<vmem>>, vector<1x1x8x128xf32>
    %897 = vector.shape_cast %896 : vector<1x1x8x128xf32> to vector<8x128xf32>
    %898 = vector.shape_cast %895 : vector<8x128xf32> to vector<1x1x8x128xf32>
    tpu.vector_store %arg6[%c0_175, %c2_176, %c0_177, %c0_178], %898 {strides = array<i32>} : memref<1x3x8x128xf32, #tpu.memory_space<vmem>>, vector<1x1x8x128xf32>,
    return
  }
  func.func @transform_0(%arg0: i32) -> (i32, i32, i32, i32) {
    %c0_i32 = arith.constant 0 : i32
    %c0_i32_0 = arith.constant 0 : i32
    %c0_i32_1 = arith.constant 0 : i32
    %c0_i32_2 = arith.constant 0 : i32
    return %arg0, %c0_i32, %c0_i32_0, %c0_i32_1 : i32, i32, i32, i32
  }
  func.func @transform_1(%arg0: i32) -> (i32, i32, i32, i32) {
    %c0_i32 = arith.constant 0 : i32
    %c0_i32_0 = arith.constant 0 : i32
    %c0_i32_1 = arith.constant 0 : i32
    %c0_i32_2 = arith.constant 0 : i32
    return %arg0, %c0_i32, %c0_i32_0, %c0_i32_1 : i32, i32, i32, i32
  }
  func.func @transform_2(%arg0: i32) -> i32 {
    %c0_i32 = arith.constant 0 : i32
    %c0_i32_0 = arith.constant 0 : i32
    return %c0_i32 : i32
  }
  func.func @transform_3(%arg0: i32) -> i32 {
    %c0_i32 = arith.constant 0 : i32
    %c0_i32_0 = arith.constant 0 : i32
    return %c0_i32 : i32
  }
  func.func @transform_4(%arg0: i32) -> (i32, i32, i32, i32) {
    %c0_i32 = arith.constant 0 : i32
    %c0_i32_0 = arith.constant 0 : i32
    %c0_i32_1 = arith.constant 0 : i32
    %c0_i32_2 = arith.constant 0 : i32
    return %arg0, %c0_i32, %c0_i32_0, %c0_i32_1 : i32, i32, i32, i32
  }
  func.func @transform_5(%arg0: i32) -> (i32, i32, i32, i32) {
    %c0_i32 = arith.constant 0 : i32
    %c0_i32_0 = arith.constant 0 : i32
    %c0_i32_1 = arith.constant 0 : i32
    %c0_i32_2 = arith.constant 0 : i32
    return %arg0, %c0_i32, %c0_i32_0, %c0_i32_1 : i32, i32, i32, i32
  }
}

</mosaic_0001>

<llo_original>
// kernel: model_forward.1
$region0: #{model_forward.1}
  #allocation0 [shape = 'u32[]', space=smem, size = 0x4, offset = 0x4, fixed_abs, tag = 'smem constant byte address 0x4 - core index']
  #allocation1 [shape = 'u32[144,128]{1,0:T(1,128)}', space=vmem, size = 0x12000, scoped, tag = 'internal scratch']
  %s0 = inlined_call_operand.vmem [shape: f32[1,6,8,128], index: 0, kind: input, shape index: {}]
  %s1 = inlined_call_operand.vmem [shape: f32[1,3,8,128], index: 1, kind: input, shape index: {}]
  %s2 = inlined_call_operand.vmem [shape: f32[162], index: 2, kind: input, shape index: {}]
  %s3 = inlined_call_operand.vmem [shape: f32[3], index: 3, kind: input, shape index: {}]
  %s4 = inlined_call_operand.vmem [shape: f32[1,3,8,128], index: 4, kind: output, shape index: {0}]
  %s5 = inlined_call_operand.vmem [shape: f32[1,3,8,128], index: 5, kind: output, shape index: {1}]
  %6 = xla_tuple %s4, %s5
  %s7 = sld [smem:[#allocation0]]
  $region42: #{model_forward.1} parent=0
    _
  %s9 = ssub.s32 1, %s7
  %s10 = scalar_select 0, %s9, %s7
  $region1: #{model_forward.1} parent=0
    #allocation2 [shape = 'u8[1024]{0}', space=smem, size = 0x400, scoped, tag = 'input window, operand 2, single buffered']
    #allocation3 [shape = 's32[1]{0}', space=sflag, size = 0x4, scoped, tag = 'scoped memory for model_forward.1']
    #allocation4 [shape = 'u8[512]{0}', space=smem, size = 0x200, scoped, tag = 'input window, operand 3, single buffered']
    #allocation5 [shape = 's32[1]{0}', space=sflag, size = 0x4, scoped, tag = 'scoped memory for model_forward.1']
    %11 = vsyncpa [#allocation3], 0
    %12 = vsyncpa [#allocation5], 0
    // Predicated region
    $region2: #{model_forward.1} parent=1 // pred_check
      _
    $region3: #{model_forward.1} parent=1 // pred_check_branch
      %14 = sbr.rel (0) target = $region5
    $region4: #{model_forward.1} parent=1 // pred_region
      _
    $region5: #{model_forward.1} parent=1 // pred_fallthru
      _
    // Predicated region
    $region6: #{model_forward.1} parent=1 // pred_check
      _
    $region7: #{model_forward.1} parent=1 // pred_check_branch
      %16 = sbr.rel (0) target = $region9
    $region8: #{model_forward.1} parent=1 // pred_region
      _
    $region9: #{model_forward.1} parent=1 // pred_fallthru
      _
    // Predicated region
    $region10: #{model_forward.1} parent=1 // pred_check
      _
    $region11: #{model_forward.1} parent=1 // pred_check_branch
      %18 = sbr.rel (0) target = $region13
    $region12: #{model_forward.1} parent=1 // pred_region
      %s20 = ssub.s32 32, 32
      %21 = vsyncadd [#allocation3], %s20
      %s23 = sshll.u32 %s2, 4
      %s24 = int_to_ptr.vmem [resolvable:$true] %s23
      %26 = dma.vmem_to_smem %s24, 32, [#allocation2], [#allocation3]
    $region13: #{model_forward.1} parent=1 // pred_fallthru
      _
    // Predicated region
    $region14: #{model_forward.1} parent=1 // pred_check
      _
    $region15: #{model_forward.1} parent=1 // pred_check_branch
      %28 = sbr.rel (0) target = $region17
    $region16: #{model_forward.1} parent=1 // pred_region
      %s30 = ssub.s32 16, 16
      %31 = vsyncadd [#allocation5], %s30
      %s33 = sshll.u32 %s3, 4
      %s34 = int_to_ptr.vmem [resolvable:$true] %s33
      %36 = dma.vmem_to_smem %s34, 16, [#allocation4], [#allocation5]
    $region17: #{model_forward.1} parent=1 // pred_fallthru
      _
    // Predicated region
    $region18: #{model_forward.1} parent=1 // pred_check
      _
    $region19: #{model_forward.1} parent=1 // pred_check_branch
      %38 = sbr.rel (0) target = $region21
    $region20: #{model_forward.1} parent=1 // pred_region
      %39 = dma.done [#allocation3], 32
    $region21: #{model_forward.1} parent=1 // pred_fallthru
      _
    // Predicated region
    $region22: #{model_forward.1} parent=1 // pred_check
      _
    $region23: #{model_forward.1} parent=1 // pred_check_branch
      %41 = sbr.rel (0) target = $region25
    $region24: #{model_forward.1} parent=1 // pred_region
      %42 = dma.done [#allocation5], 16
    $region25: #{model_forward.1} parent=1 // pred_fallthru
      _
    %43 = sfence
    %v44 = vlaneseq
    %v45 = vand.u32 %v44, 127
    %v46 = vlaneseq
    %v47 = vshrl.u32 %v46, 7
    %vm48 = vcmp.lt.s32.totalorder %v45, 0
    %v49 = vsub.s32 0, %v45
    %v50 = vsel %vm48, %v49, %v45
    %v51 = vshrl.u32 %v50, 5
    %v52 = vand.u32 %v50, 31
    %v53 = vsub.s32 0, %v52
    %v54 = vsel %vm48, %v53, %v52
    %vm55 = vcmp.ne.s32.totalorder %v54, 0
    %vm56 = vcmp.lt.s32.totalorder %v54, 0
    %vm57 = vmand %vm56, %vm55
    %v58 = vadd.s32 %v54, 32
    %v59 = vsel %vm57, %v58, %v54
    %vm60 = vcmp.eq.s32.totalorder %v47, 7
    %vm61 = vcmp.ge.s32.totalorder %v45, 96
    %vm62 = vmand %vm60, %vm61
    %vm63 = vmxor %vm62, 1
    %vm64 = vcmp.eq.s32.totalorder %v47, 0
    %vm65 = vcmp.lt.s32.totalorder %v45, 32
    %vm66 = vmand %vm64, %vm65
    %vm67 = vmxor %vm66, 1
    %vm68 = vcmp.ne.s32.totalorder %v59, 31
    %vm69 = vcmp.ne.s32.totalorder %v59, 0
    %vm70 = vcmp.lt.s32.totalorder %v45, 96
    %vm71 = vcmp.ge.s32.totalorder %v45, 32
    %s72 = sld [smem:[#allocation4]]
    %v73 = vstv %s72
    %s74 = sld [smem:[#allocation4 + $0x1]]
    %v75 = vstv %s74
    %s76 = sld [smem:[#allocation4 + $0x2]]
    %v77 = vstv %s76
    %v78 = vld [vmem:[%s0] sm:$0xff]
    %79 = vrot.lane.b32.xlu0 %v78, 32
    %v80 = vpop.permute.xlu0 %79
    %v81 = vrot.slane %v80, 7
    %v82 = vsel %vm71, %v80, %v81
    %v83 = vsel %vm67, %v82, 0.0
    %84 = vrot.lane.b32.xlu0 %v78, 96
    %v85 = vpop.permute.xlu0 %84
    %v86 = vrot.slane %v85, 1
    %v87 = vsel %vm70, %v85, %v86
    %v88 = vsel %vm63, %v87, 0.0
    %89 = vrot.lane.b32.xlu0 %v83, 1
    %v90 = vpop.permute.xlu0 %89
    %v91 = vsel %vm69, %v90, 0.0
    %92 = vrot.lane.b32.xlu0 %v83, 127
    %v93 = vpop.permute.xlu0 %92
    %v94 = vsel %vm68, %v93, 0.0
    %s95 = sld [smem:[#allocation2]]
    %v96 = vstv %s95
    %v97 = vmul.f32 %v96, %v91
    %v98 = vadd.f32 %v73, %v97
    %s99 = sld [smem:[#allocation2 + $0x36]]
    %v100 = vstv %s99
    %v101 = vmul.f32 %v100, %v91
    %v102 = vadd.f32 %v75, %v101
    %s103 = sld [smem:[#allocation2 + $0x6c]]
    %v104 = vstv %s103
    %v105 = vmul.f32 %v104, %v91
    %v106 = vadd.f32 %v77, %v105
    %s107 = sld [smem:[#allocation2 + $0x1]]
    %v108 = vstv %s107
    %v109 = vmul.f32 %v108, %v83
    %v110 = vadd.f32 %v98, %v109
    %s111 = sld [smem:[#allocation2 + $0x37]]
    %v112 = vstv %s111
    %v113 = vmul.f32 %v112, %v83
    %v114 = vadd.f32 %v102, %v113
    %s115 = sld [smem:[#allocation2 + $0x6d]]
    %v116 = vstv %s115
    %v117 = vmul.f32 %v116, %v83
    %v118 = vadd.f32 %v106, %v117
    %s119 = sld [smem:[#allocation2 + $0x2]]
    %v120 = vstv %s119
    %v121 = vmul.f32 %v120, %v94
    %v122 = vadd.f32 %v110, %v121
    %s123 = sld [smem:[#allocation2 + $0x38]]
    %v124 = vstv %s123
    %v125 = vmul.f32 %v124, %v94
    %v126 = vadd.f32 %v114, %v125
    %s127 = sld [smem:[#allocation2 + $0x6e]]
    %v128 = vstv %s127
    %v129 = vmul.f32 %v128, %v94
    %v130 = vadd.f32 %v118, %v129
    %131 = vrot.lane.b32.xlu0 %v78, 1
    %v132 = vpop.permute.xlu0 %131
    %v133 = vsel %vm69, %v132, 0.0
    %134 = vrot.lane.b32.xlu0 %v78, 127
    %v135 = vpop.permute.xlu0 %134
    %v136 = vsel %vm68, %v135, 0.0
    %s137 = sld [smem:[#allocation2 + $0x3]]
    %v138 = vstv %s137
    %v139 = vmul.f32 %v138, %v133
    %v140 = vadd.f32 %v122, %v139
    %s141 = sld [smem:[#allocation2 + $0x39]]
    %v142 = vstv %s141
    %v143 = vmul.f32 %v142, %v133
    %v144 = vadd.f32 %v126, %v143
    %s145 = sld [smem:[#allocation2 + $0x6f]]
    %v146 = vstv %s145
    %v147 = vmul.f32 %v146, %v133
    %v148 = vadd.f32 %v130, %v147
    %s149 = sld [smem:[#allocation2 + $0x4]]
    %v150 = vstv %s149
    %v151 = vmul.f32 %v150, %v78
    %v152 = vadd.f32 %v140, %v151
    %s153 = sld [smem:[#allocation2 + $0x3a]]
    %v154 = vstv %s153
    %v155 = vmul.f32 %v154, %v78
    %v156 = vadd.f32 %v144, %v155
    %s157 = sld [smem:[#allocation2 + $0x70]]
    %v158 = vstv %s157
    %v159 = vmul.f32 %v158, %v78
    %v160 = vadd.f32 %v148, %v159
    %s161 = sld [smem:[#allocation2 + $0x5]]
    %v162 = vstv %s161
    %v163 = vmul.f32 %v162, %v136
    %v164 = vadd.f32 %v152, %v163
    %s165 = sld [smem:[#allocation2 + $0x3b]]
    %v166 = vstv %s165
    %v167 = vmul.f32 %v166, %v136
    %v168 = vadd.f32 %v156, %v167
    %s169 = sld [smem:[#allocation2 + $0x71]]
    %v170 = vstv %s169
    %v171 = vmul.f32 %v170, %v136
    %v172 = vadd.f32 %v160, %v171
    %173 = vrot.lane.b32.xlu0 %v88, 1
    %v174 = vpop.permute.xlu0 %173
    %v175 = vsel %vm69, %v174, 0.0
    %176 = vrot.lane.b32.xlu0 %v88, 127
    %v177 = vpop.permute.xlu0 %176
    %v178 = vsel %vm68, %v177, 0.0
    %s179 = sld [smem:[#allocation2 + $0x6]]
    %v180 = vstv %s179
    %v181 = vmul.f32 %v180, %v175
    %v182 = vadd.f32 %v164, %v181
    %s183 = sld [smem:[#allocation2 + $0x3c]]
    %v184 = vstv %s183
    %v185 = vmul.f32 %v184, %v175
    %v186 = vadd.f32 %v168, %v185
    %s187 = sld [smem:[#allocation2 + $0x72]]
    %v188 = vstv %s187
    %v189 = vmul.f32 %v188, %v175
    %v190 = vadd.f32 %v172, %v189
    %s191 = sld [smem:[#allocation2 + $0x7]]
    %v192 = vstv %s191
    %v193 = vmul.f32 %v192, %v88
    %v194 = vadd.f32 %v182, %v193
    %s195 = sld [smem:[#allocation2 + $0x3d]]
    %v196 = vstv %s195
    %v197 = vmul.f32 %v196, %v88
    %v198 = vadd.f32 %v186, %v197
    %s199 = sld [smem:[#allocation2 + $0x73]]
    %v200 = vstv %s199
    %v201 = vmul.f32 %v200, %v88
    %v202 = vadd.f32 %v190, %v201
    %s203 = sld [smem:[#allocation2 + $0x8]]
    %v204 = vstv %s203
    %v205 = vmul.f32 %v204, %v178
    %v206 = vadd.f32 %v194, %v205
    %s207 = sld [smem:[#allocation2 + $0x3e]]
    %v208 = vstv %s207
    %v209 = vmul.f32 %v208, %v178
    %v210 = vadd.f32 %v198, %v209
    %s211 = sld [smem:[#allocation2 + $0x74]]
    %v212 = vstv %s211
    %v213 = vmul.f32 %v212, %v178
    %v214 = vadd.f32 %v202, %v213
    %s215 = scalar_lea.vmem %s0, 8
    %v216 = vld [vmem:[%s215] sm:$0xff]
    %217 = vrot.lane.b32.xlu0 %v216, 32
    %v218 = vpop.permute.xlu0 %217
    %v219 = vrot.slane %v218, 7
    %v220 = vsel %vm71, %v218, %v219
    %v221 = vsel %vm67, %v220, 0.0
    %222 = vrot.lane.b32.xlu0 %v216, 96
    %v223 = vpop.permute.xlu0 %222
    %v224 = vrot.slane %v223, 1
    %v225 = vsel %vm70, %v223, %v224
    %v226 = vsel %vm63, %v225, 0.0
    %227 = vrot.lane.b32.xlu0 %v221, 1
    %v228 = vpop.permute.xlu0 %227
    %v229 = vsel %vm69, %v228, 0.0
    %230 = vrot.lane.b32.xlu0 %v221, 127
    %v231 = vpop.permute.xlu0 %230
    %v232 = vsel %vm68, %v231, 0.0
    %s233 = sld [smem:[#allocation2 + $0x9]]
    %v234 = vstv %s233
    %v235 = vmul.f32 %v234, %v229
    %v236 = vadd.f32 %v206, %v235
    %s237 = sld [smem:[#allocation2 + $0x3f]]
    %v238 = vstv %s237
    %v239 = vmul.f32 %v238, %v229
    %v240 = vadd.f32 %v210, %v239
    %s241 = sld [smem:[#allocation2 + $0x75]]
    %v242 = vstv %s241
    %v243 = vmul.f32 %v242, %v229
    %v244 = vadd.f32 %v214, %v243
    %s245 = sld [smem:[#allocation2 + $0xa]]
    %v246 = vstv %s245
    %v247 = vmul.f32 %v246, %v221
    %v248 = vadd.f32 %v236, %v247
    %s249 = sld [smem:[#allocation2 + $0x40]]
    %v250 = vstv %s249
    %v251 = vmul.f32 %v250, %v221
    %v252 = vadd.f32 %v240, %v251
    %s253 = sld [smem:[#allocation2 + $0x76]]
    %v254 = vstv %s253
    %v255 = vmul.f32 %v254, %v221
    %v256 = vadd.f32 %v244, %v255
    %s257 = sld [smem:[#allocation2 + $0xb]]
    %v258 = vstv %s257
    %v259 = vmul.f32 %v258, %v232
    %v260 = vadd.f32 %v248, %v259
    %s261 = sld [smem:[#allocation2 + $0x41]]
    %v262 = vstv %s261
    %v263 = vmul.f32 %v262, %v232
    %v264 = vadd.f32 %v252, %v263
    %s265 = sld [smem:[#allocation2 + $0x77]]
    %v266 = vstv %s265
    %v267 = vmul.f32 %v266, %v232
    %v268 = vadd.f32 %v256, %v267
    %269 = vrot.lane.b32.xlu0 %v216, 1
    %v270 = vpop.permute.xlu0 %269
    %v271 = vsel %vm69, %v270, 0.0
    %272 = vrot.lane.b32.xlu0 %v216, 127
    %v273 = vpop.permute.xlu0 %272
    %v274 = vsel %vm68, %v273, 0.0
    %s275 = sld [smem:[#allocation2 + $0xc]]
    %v276 = vstv %s275
    %v277 = vmul.f32 %v276, %v271
    %v278 = vadd.f32 %v260, %v277
    %s279 = sld [smem:[#allocation2 + $0x42]]
    %v280 = vstv %s279
    %v281 = vmul.f32 %v280, %v271
    %v282 = vadd.f32 %v264, %v281
    %s283 = sld [smem:[#allocation2 + $0x78]]
    %v284 = vstv %s283
    %v285 = vmul.f32 %v284, %v271
    %v286 = vadd.f32 %v268, %v285
    %s287 = sld [smem:[#allocation2 + $0xd]]
    %v288 = vstv %s287
    %v289 = vmul.f32 %v288, %v216
    %v290 = vadd.f32 %v278, %v289
    %s291 = sld [smem:[#allocation2 + $0x43]]
    %v292 = vstv %s291
    %v293 = vmul.f32 %v292, %v216
    %v294 = vadd.f32 %v282, %v293
    %s295 = sld [smem:[#allocation2 + $0x79]]
    %v296 = vstv %s295
    %v297 = vmul.f32 %v296, %v216
    %v298 = vadd.f32 %v286, %v297
    %s299 = sld [smem:[#allocation2 + $0xe]]
    %v300 = vstv %s299
    %v301 = vmul.f32 %v300, %v274
    %v302 = vadd.f32 %v290, %v301
    %s303 = sld [smem:[#allocation2 + $0x44]]
    %v304 = vstv %s303
    %v305 = vmul.f32 %v304, %v274
    %v306 = vadd.f32 %v294, %v305
    %s307 = sld [smem:[#allocation2 + $0x7a]]
    %v308 = vstv %s307
    %v309 = vmul.f32 %v308, %v274
    %v310 = vadd.f32 %v298, %v309
    %311 = vrot.lane.b32.xlu0 %v226, 1
    %v312 = vpop.permute.xlu0 %311
    %v313 = vsel %vm69, %v312, 0.0
    %314 = vrot.lane.b32.xlu0 %v226, 127
    %v315 = vpop.permute.xlu0 %314
    %v316 = vsel %vm68, %v315, 0.0
    %s317 = sld [smem:[#allocation2 + $0xf]]
    %v318 = vstv %s317
    %v319 = vmul.f32 %v318, %v313
    %v320 = vadd.f32 %v302, %v319
    %s321 = sld [smem:[#allocation2 + $0x45]]
    %v322 = vstv %s321
    %v323 = vmul.f32 %v322, %v313
    %v324 = vadd.f32 %v306, %v323
    %s325 = sld [smem:[#allocation2 + $0x7b]]
    %v326 = vstv %s325
    %v327 = vmul.f32 %v326, %v313
    %v328 = vadd.f32 %v310, %v327
    %s329 = sld [smem:[#allocation2 + $0x10]]
    %v330 = vstv %s329
    %v331 = vmul.f32 %v330, %v226
    %v332 = vadd.f32 %v320, %v331
    %s333 = sld [smem:[#allocation2 + $0x46]]
    %v334 = vstv %s333
    %v335 = vmul.f32 %v334, %v226
    %v336 = vadd.f32 %v324, %v335
    %s337 = sld [smem:[#allocation2 + $0x7c]]
    %v338 = vstv %s337
    %v339 = vmul.f32 %v338, %v226
    %v340 = vadd.f32 %v328, %v339
    %s341 = sld [smem:[#allocation2 + $0x11]]
    %v342 = vstv %s341
    %v343 = vmul.f32 %v342, %v316
    %v344 = vadd.f32 %v332, %v343
    %s345 = sld [smem:[#allocation2 + $0x47]]
    %v346 = vstv %s345
    %v347 = vmul.f32 %v346, %v316
    %v348 = vadd.f32 %v336, %v347
    %s349 = sld [smem:[#allocation2 + $0x7d]]
    %v350 = vstv %s349
    %v351 = vmul.f32 %v350, %v316
    %v352 = vadd.f32 %v340, %v351
    %s353 = scalar_lea.vmem %s0, 16
    %v354 = vld [vmem:[%s353] sm:$0xff]
    %355 = vrot.lane.b32.xlu0 %v354, 32
    %v356 = vpop.permute.xlu0 %355
    %v357 = vrot.slane %v356, 7
    %v358 = vsel %vm71, %v356, %v357
    %v359 = vsel %vm67, %v358, 0.0
    %360 = vrot.lane.b32.xlu0 %v354, 96
    %v361 = vpop.permute.xlu0 %360
    %v362 = vrot.slane %v361, 1
    %v363 = vsel %vm70, %v361, %v362
    %v364 = vsel %vm63, %v363, 0.0
    %365 = vrot.lane.b32.xlu0 %v359, 1
    %v366 = vpop.permute.xlu0 %365
    %v367 = vsel %vm69, %v366, 0.0
    %368 = vrot.lane.b32.xlu0 %v359, 127
    %v369 = vpop.permute.xlu0 %368
    %v370 = vsel %vm68, %v369, 0.0
    %s371 = sld [smem:[#allocation2 + $0x12]]
    %v372 = vstv %s371
    %v373 = vmul.f32 %v372, %v367
    %v374 = vadd.f32 %v344, %v373
    %s375 = sld [smem:[#allocation2 + $0x48]]
    %v376 = vstv %s375
    %v377 = vmul.f32 %v376, %v367
    %v378 = vadd.f32 %v348, %v377
    %s379 = sld [smem:[#allocation2 + $0x7e]]
    %v380 = vstv %s379
    %v381 = vmul.f32 %v380, %v367
    %v382 = vadd.f32 %v352, %v381
    %s383 = sld [smem:[#allocation2 + $0x13]]
    %v384 = vstv %s383
    %v385 = vmul.f32 %v384, %v359
    %v386 = vadd.f32 %v374, %v385
    %s387 = sld [smem:[#allocation2 + $0x49]]
    %v388 = vstv %s387
    %v389 = vmul.f32 %v388, %v359
    %v390 = vadd.f32 %v378, %v389
    %s391 = sld [smem:[#allocation2 + $0x7f]]
    %v392 = vstv %s391
    %v393 = vmul.f32 %v392, %v359
    %v394 = vadd.f32 %v382, %v393
    %s395 = sld [smem:[#allocation2 + $0x14]]
    %v396 = vstv %s395
    %v397 = vmul.f32 %v396, %v370
    %v398 = vadd.f32 %v386, %v397
    %s399 = sld [smem:[#allocation2 + $0x4a]]
    %v400 = vstv %s399
    %v401 = vmul.f32 %v400, %v370
    %v402 = vadd.f32 %v390, %v401
    %s403 = sld [smem:[#allocation2 + $0x80]]
    %v404 = vstv %s403
    %v405 = vmul.f32 %v404, %v370
    %v406 = vadd.f32 %v394, %v405
    %407 = vrot.lane.b32.xlu0 %v354, 1
    %v408 = vpop.permute.xlu0 %407
    %v409 = vsel %vm69, %v408, 0.0
    %410 = vrot.lane.b32.xlu0 %v354, 127
    %v411 = vpop.permute.xlu0 %410
    %v412 = vsel %vm68, %v411, 0.0
    %s413 = sld [smem:[#allocation2 + $0x15]]
    %v414 = vstv %s413
    %v415 = vmul.f32 %v414, %v409
    %v416 = vadd.f32 %v398, %v415
    %s417 = sld [smem:[#allocation2 + $0x4b]]
    %v418 = vstv %s417
    %v419 = vmul.f32 %v418, %v409
    %v420 = vadd.f32 %v402, %v419
    %s421 = sld [smem:[#allocation2 + $0x81]]
    %v422 = vstv %s421
    %v423 = vmul.f32 %v422, %v409
    %v424 = vadd.f32 %v406, %v423
    %s425 = sld [smem:[#allocation2 + $0x16]]
    %v426 = vstv %s425
    %v427 = vmul.f32 %v426, %v354
    %v428 = vadd.f32 %v416, %v427
    %s429 = sld [smem:[#allocation2 + $0x4c]]
    %v430 = vstv %s429
    %v431 = vmul.f32 %v430, %v354
    %v432 = vadd.f32 %v420, %v431
    %s433 = sld [smem:[#allocation2 + $0x82]]
    %v434 = vstv %s433
    %v435 = vmul.f32 %v434, %v354
    %v436 = vadd.f32 %v424, %v435
    %s437 = sld [smem:[#allocation2 + $0x17]]
    %v438 = vstv %s437
    %v439 = vmul.f32 %v438, %v412
    %v440 = vadd.f32 %v428, %v439
    %s441 = sld [smem:[#allocation2 + $0x4d]]
    %v442 = vstv %s441
    %v443 = vmul.f32 %v442, %v412
    %v444 = vadd.f32 %v432, %v443
    %s445 = sld [smem:[#allocation2 + $0x83]]
    %v446 = vstv %s445
    %v447 = vmul.f32 %v446, %v412
    %v448 = vadd.f32 %v436, %v447
    %449 = vrot.lane.b32.xlu0 %v364, 1
    %v450 = vpop.permute.xlu0 %449
    %v451 = vsel %vm69, %v450, 0.0
    %452 = vrot.lane.b32.xlu0 %v364, 127
    %v453 = vpop.permute.xlu0 %452
    %v454 = vsel %vm68, %v453, 0.0
    %s455 = sld [smem:[#allocation2 + $0x18]]
    %v456 = vstv %s455
    %v457 = vmul.f32 %v456, %v451
    %v458 = vadd.f32 %v440, %v457
    %s459 = sld [smem:[#allocation2 + $0x4e]]
    %v460 = vstv %s459
    %v461 = vmul.f32 %v460, %v451
    %v462 = vadd.f32 %v444, %v461
    %s463 = sld [smem:[#allocation2 + $0x84]]
    %v464 = vstv %s463
    %v465 = vmul.f32 %v464, %v451
    %v466 = vadd.f32 %v448, %v465
    %s467 = sld [smem:[#allocation2 + $0x19]]
    %v468 = vstv %s467
    %v469 = vmul.f32 %v468, %v364
    %v470 = vadd.f32 %v458, %v469
    %s471 = sld [smem:[#allocation2 + $0x4f]]
    %v472 = vstv %s471
    %v473 = vmul.f32 %v472, %v364
    %v474 = vadd.f32 %v462, %v473
    %s475 = sld [smem:[#allocation2 + $0x85]]
    %v476 = vstv %s475
    %v477 = vmul.f32 %v476, %v364
    %v478 = vadd.f32 %v466, %v477
    %s479 = sld [smem:[#allocation2 + $0x1a]]
    %v480 = vstv %s479
    %v481 = vmul.f32 %v480, %v454
    %v482 = vadd.f32 %v470, %v481
    %s483 = sld [smem:[#allocation2 + $0x50]]
    %v484 = vstv %s483
    %v485 = vmul.f32 %v484, %v454
    %v486 = vadd.f32 %v474, %v485
    %s487 = sld [smem:[#allocation2 + $0x86]]
    %v488 = vstv %s487
    %v489 = vmul.f32 %v488, %v454
    %v490 = vadd.f32 %v478, %v489
    %s491 = scalar_lea.vmem %s0, 24
    %v492 = vld [vmem:[%s491] sm:$0xff]
    %493 = vrot.lane.b32.xlu0 %v492, 32
    %v494 = vpop.permute.xlu0 %493
    %v495 = vrot.slane %v494, 7
    %v496 = vsel %vm71, %v494, %v495
    %v497 = vsel %vm67, %v496, 0.0
    %498 = vrot.lane.b32.xlu0 %v492, 96
    %v499 = vpop.permute.xlu0 %498
    %v500 = vrot.slane %v499, 1
    %v501 = vsel %vm70, %v499, %v500
    %v502 = vsel %vm63, %v501, 0.0
    %503 = vrot.lane.b32.xlu0 %v497, 1
    %v504 = vpop.permute.xlu0 %503
    %v505 = vsel %vm69, %v504, 0.0
    %506 = vrot.lane.b32.xlu0 %v497, 127
    %v507 = vpop.permute.xlu0 %506
    %v508 = vsel %vm68, %v507, 0.0
    %s509 = sld [smem:[#allocation2 + $0x1b]]
    %v510 = vstv %s509
    %v511 = vmul.f32 %v510, %v505
    %v512 = vadd.f32 %v482, %v511
    %s513 = sld [smem:[#allocation2 + $0x51]]
    %v514 = vstv %s513
    %v515 = vmul.f32 %v514, %v505
    %v516 = vadd.f32 %v486, %v515
    %s517 = sld [smem:[#allocation2 + $0x87]]
    %v518 = vstv %s517
    %v519 = vmul.f32 %v518, %v505
    %v520 = vadd.f32 %v490, %v519
    %s521 = sld [smem:[#allocation2 + $0x1c]]
    %v522 = vstv %s521
    %v523 = vmul.f32 %v522, %v497
    %v524 = vadd.f32 %v512, %v523
    %s525 = sld [smem:[#allocation2 + $0x52]]
    %v526 = vstv %s525
    %v527 = vmul.f32 %v526, %v497
    %v528 = vadd.f32 %v516, %v527
    %s529 = sld [smem:[#allocation2 + $0x88]]
    %v530 = vstv %s529
    %v531 = vmul.f32 %v530, %v497
    %v532 = vadd.f32 %v520, %v531
    %s533 = sld [smem:[#allocation2 + $0x1d]]
    %v534 = vstv %s533
    %v535 = vmul.f32 %v534, %v508
    %v536 = vadd.f32 %v524, %v535
    %s537 = sld [smem:[#allocation2 + $0x53]]
    %v538 = vstv %s537
    %v539 = vmul.f32 %v538, %v508
    %v540 = vadd.f32 %v528, %v539
    %s541 = sld [smem:[#allocation2 + $0x89]]
    %v542 = vstv %s541
    %v543 = vmul.f32 %v542, %v508
    %v544 = vadd.f32 %v532, %v543
    %545 = vrot.lane.b32.xlu0 %v492, 1
    %v546 = vpop.permute.xlu0 %545
    %v547 = vsel %vm69, %v546, 0.0
    %548 = vrot.lane.b32.xlu0 %v492, 127
    %v549 = vpop.permute.xlu0 %548
    %v550 = vsel %vm68, %v549, 0.0
    %s551 = sld [smem:[#allocation2 + $0x1e]]
    %v552 = vstv %s551
    %v553 = vmul.f32 %v552, %v547
    %v554 = vadd.f32 %v536, %v553
    %s555 = sld [smem:[#allocation2 + $0x54]]
    %v556 = vstv %s555
    %v557 = vmul.f32 %v556, %v547
    %v558 = vadd.f32 %v540, %v557
    %s559 = sld [smem:[#allocation2 + $0x8a]]
    %v560 = vstv %s559
    %v561 = vmul.f32 %v560, %v547
    %v562 = vadd.f32 %v544, %v561
    %s563 = sld [smem:[#allocation2 + $0x1f]]
    %v564 = vstv %s563
    %v565 = vmul.f32 %v564, %v492
    %v566 = vadd.f32 %v554, %v565
    %s567 = sld [smem:[#allocation2 + $0x55]]
    %v568 = vstv %s567
    %v569 = vmul.f32 %v568, %v492
    %v570 = vadd.f32 %v558, %v569
    %s571 = sld [smem:[#allocation2 + $0x8b]]
    %v572 = vstv %s571
    %v573 = vmul.f32 %v572, %v492
    %v574 = vadd.f32 %v562, %v573
    %s575 = sld [smem:[#allocation2 + $0x20]]
    %v576 = vstv %s575
    %v577 = vmul.f32 %v576, %v550
    %v578 = vadd.f32 %v566, %v577
    %s579 = sld [smem:[#allocation2 + $0x56]]
    %v580 = vstv %s579
    %v581 = vmul.f32 %v580, %v550
    %v582 = vadd.f32 %v570, %v581
    %s583 = sld [smem:[#allocation2 + $0x8c]]
    %v584 = vstv %s583
    %v585 = vmul.f32 %v584, %v550
    %v586 = vadd.f32 %v574, %v585
    %587 = vrot.lane.b32.xlu0 %v502, 1
    %v588 = vpop.permute.xlu0 %587
    %v589 = vsel %vm69, %v588, 0.0
    %590 = vrot.lane.b32.xlu0 %v502, 127
    %v591 = vpop.permute.xlu0 %590
    %v592 = vsel %vm68, %v591, 0.0
    %s593 = sld [smem:[#allocation2 + $0x21]]
    %v594 = vstv %s593
    %v595 = vmul.f32 %v594, %v589
    %v596 = vadd.f32 %v578, %v595
    %s597 = sld [smem:[#allocation2 + $0x57]]
    %v598 = vstv %s597
    %v599 = vmul.f32 %v598, %v589
    %v600 = vadd.f32 %v582, %v599
    %s601 = sld [smem:[#allocation2 + $0x8d]]
    %v602 = vstv %s601
    %v603 = vmul.f32 %v602, %v589
    %v604 = vadd.f32 %v586, %v603
    %s605 = sld [smem:[#allocation2 + $0x22]]
    %v606 = vstv %s605
    %v607 = vmul.f32 %v606, %v502
    %v608 = vadd.f32 %v596, %v607
    %s609 = sld [smem:[#allocation2 + $0x58]]
    %v610 = vstv %s609
    %v611 = vmul.f32 %v610, %v502
    %v612 = vadd.f32 %v600, %v611
    %s613 = sld [smem:[#allocation2 + $0x8e]]
    %v614 = vstv %s613
    %v615 = vmul.f32 %v614, %v502
    %v616 = vadd.f32 %v604, %v615
    %s617 = sld [smem:[#allocation2 + $0x23]]
    %v618 = vstv %s617
    %v619 = vmul.f32 %v618, %v592
    %v620 = vadd.f32 %v608, %v619
    %s621 = sld [smem:[#allocation2 + $0x59]]
    %v622 = vstv %s621
    %v623 = vmul.f32 %v622, %v592
    %v624 = vadd.f32 %v612, %v623
    %s625 = sld [smem:[#allocation2 + $0x8f]]
    %v626 = vstv %s625
    %v627 = vmul.f32 %v626, %v592
    %v628 = vadd.f32 %v616, %v627
    %s629 = scalar_lea.vmem %s0, 32
    %v630 = vld [vmem:[%s629] sm:$0xff]
    %631 = vrot.lane.b32.xlu0 %v630, 32
    %v632 = vpop.permute.xlu0 %631
    %v633 = vrot.slane %v632, 7
    %v634 = vsel %vm71, %v632, %v633
    %v635 = vsel %vm67, %v634, 0.0
    %636 = vrot.lane.b32.xlu0 %v630, 96
    %v637 = vpop.permute.xlu0 %636
    %v638 = vrot.slane %v637, 1
    %v639 = vsel %vm70, %v637, %v638
    %v640 = vsel %vm63, %v639, 0.0
    %641 = vrot.lane.b32.xlu0 %v635, 1
    %v642 = vpop.permute.xlu0 %641
    %v643 = vsel %vm69, %v642, 0.0
    %644 = vrot.lane.b32.xlu0 %v635, 127
    %v645 = vpop.permute.xlu0 %644
    %v646 = vsel %vm68, %v645, 0.0
    %s647 = sld [smem:[#allocation2 + $0x24]]
    %v648 = vstv %s647
    %v649 = vmul.f32 %v648, %v643
    %v650 = vadd.f32 %v620, %v649
    %s651 = sld [smem:[#allocation2 + $0x5a]]
    %v652 = vstv %s651
    %v653 = vmul.f32 %v652, %v643
    %v654 = vadd.f32 %v624, %v653
    %s655 = sld [smem:[#allocation2 + $0x90]]
    %v656 = vstv %s655
    %v657 = vmul.f32 %v656, %v643
    %v658 = vadd.f32 %v628, %v657
    %s659 = sld [smem:[#allocation2 + $0x25]]
    %v660 = vstv %s659
    %v661 = vmul.f32 %v660, %v635
    %v662 = vadd.f32 %v650, %v661
    %s663 = sld [smem:[#allocation2 + $0x5b]]
    %v664 = vstv %s663
    %v665 = vmul.f32 %v664, %v635
    %v666 = vadd.f32 %v654, %v665
    %s667 = sld [smem:[#allocation2 + $0x91]]
    %v668 = vstv %s667
    %v669 = vmul.f32 %v668, %v635
    %v670 = vadd.f32 %v658, %v669
    %s671 = sld [smem:[#allocation2 + $0x26]]
    %v672 = vstv %s671
    %v673 = vmul.f32 %v672, %v646
    %v674 = vadd.f32 %v662, %v673
    %s675 = sld [smem:[#allocation2 + $0x5c]]
    %v676 = vstv %s675
    %v677 = vmul.f32 %v676, %v646
    %v678 = vadd.f32 %v666, %v677
    %s679 = sld [smem:[#allocation2 + $0x92]]
    %v680 = vstv %s679
    %v681 = vmul.f32 %v680, %v646
    %v682 = vadd.f32 %v670, %v681
    %683 = vrot.lane.b32.xlu0 %v630, 1
    %v684 = vpop.permute.xlu0 %683
    %v685 = vsel %vm69, %v684, 0.0
    %686 = vrot.lane.b32.xlu0 %v630, 127
    %v687 = vpop.permute.xlu0 %686
    %v688 = vsel %vm68, %v687, 0.0
    %s689 = sld [smem:[#allocation2 + $0x27]]
    %v690 = vstv %s689
    %v691 = vmul.f32 %v690, %v685
    %v692 = vadd.f32 %v674, %v691
    %s693 = sld [smem:[#allocation2 + $0x5d]]
    %v694 = vstv %s693
    %v695 = vmul.f32 %v694, %v685
    %v696 = vadd.f32 %v678, %v695
    %s697 = sld [smem:[#allocation2 + $0x93]]
    %v698 = vstv %s697
    %v699 = vmul.f32 %v698, %v685
    %v700 = vadd.f32 %v682, %v699
    %s701 = sld [smem:[#allocation2 + $0x28]]
    %v702 = vstv %s701
    %v703 = vmul.f32 %v702, %v630
    %v704 = vadd.f32 %v692, %v703
    %s705 = sld [smem:[#allocation2 + $0x5e]]
    %v706 = vstv %s705
    %v707 = vmul.f32 %v706, %v630
    %v708 = vadd.f32 %v696, %v707
    %s709 = sld [smem:[#allocation2 + $0x94]]
    %v710 = vstv %s709
    %v711 = vmul.f32 %v710, %v630
    %v712 = vadd.f32 %v700, %v711
    %s713 = sld [smem:[#allocation2 + $0x29]]
    %v714 = vstv %s713
    %v715 = vmul.f32 %v714, %v688
    %v716 = vadd.f32 %v704, %v715
    %s717 = sld [smem:[#allocation2 + $0x5f]]
    %v718 = vstv %s717
    %v719 = vmul.f32 %v718, %v688
    %v720 = vadd.f32 %v708, %v719
    %s721 = sld [smem:[#allocation2 + $0x95]]
    %v722 = vstv %s721
    %v723 = vmul.f32 %v722, %v688
    %v724 = vadd.f32 %v712, %v723
    %725 = vrot.lane.b32.xlu0 %v640, 1
    %v726 = vpop.permute.xlu0 %725
    %v727 = vsel %vm69, %v726, 0.0
    %728 = vrot.lane.b32.xlu0 %v640, 127
    %v729 = vpop.permute.xlu0 %728
    %v730 = vsel %vm68, %v729, 0.0
    %s731 = sld [smem:[#allocation2 + $0x2a]]
    %v732 = vstv %s731
    %v733 = vmul.f32 %v732, %v727
    %v734 = vadd.f32 %v716, %v733
    %s735 = sld [smem:[#allocation2 + $0x60]]
    %v736 = vstv %s735
    %v737 = vmul.f32 %v736, %v727
    %v738 = vadd.f32 %v720, %v737
    %s739 = sld [smem:[#allocation2 + $0x96]]
    %v740 = vstv %s739
    %v741 = vmul.f32 %v740, %v727
    %v742 = vadd.f32 %v724, %v741
    %s743 = sld [smem:[#allocation2 + $0x2b]]
    %v744 = vstv %s743
    %v745 = vmul.f32 %v744, %v640
    %v746 = vadd.f32 %v734, %v745
    %s747 = sld [smem:[#allocation2 + $0x61]]
    %v748 = vstv %s747
    %v749 = vmul.f32 %v748, %v640
    %v750 = vadd.f32 %v738, %v749
    %s751 = sld [smem:[#allocation2 + $0x97]]
    %v752 = vstv %s751
    %v753 = vmul.f32 %v752, %v640
    %v754 = vadd.f32 %v742, %v753
    %s755 = sld [smem:[#allocation2 + $0x2c]]
    %v756 = vstv %s755
    %v757 = vmul.f32 %v756, %v730
    %v758 = vadd.f32 %v746, %v757
    %s759 = sld [smem:[#allocation2 + $0x62]]
    %v760 = vstv %s759
    %v761 = vmul.f32 %v760, %v730
    %v762 = vadd.f32 %v750, %v761
    %s763 = sld [smem:[#allocation2 + $0x98]]
    %v764 = vstv %s763
    %v765 = vmul.f32 %v764, %v730
    %v766 = vadd.f32 %v754, %v765
    %s767 = scalar_lea.vmem %s0, 40
    %v768 = vld [vmem:[%s767] sm:$0xff]
    %769 = vrot.lane.b32.xlu0 %v768, 32
    %v770 = vpop.permute.xlu0 %769
    %v771 = vrot.slane %v770, 7
    %v772 = vsel %vm71, %v770, %v771
    %v773 = vsel %vm67, %v772, 0.0
    %774 = vrot.lane.b32.xlu0 %v768, 96
    %v775 = vpop.permute.xlu0 %774
    %v776 = vrot.slane %v775, 1
    %v777 = vsel %vm70, %v775, %v776
    %v778 = vsel %vm63, %v777, 0.0
    %779 = vrot.lane.b32.xlu0 %v773, 1
    %v780 = vpop.permute.xlu0 %779
    %v781 = vsel %vm69, %v780, 0.0
    %782 = vrot.lane.b32.xlu0 %v773, 127
    %v783 = vpop.permute.xlu0 %782
    %v784 = vsel %vm68, %v783, 0.0
    %s785 = sld [smem:[#allocation2 + $0x2d]]
    %v786 = vstv %s785
    %v787 = vmul.f32 %v786, %v781
    %v788 = vadd.f32 %v758, %v787
    %s789 = sld [smem:[#allocation2 + $0x63]]
    %v790 = vstv %s789
    %v791 = vmul.f32 %v790, %v781
    %v792 = vadd.f32 %v762, %v791
    %s793 = sld [smem:[#allocation2 + $0x99]]
    %v794 = vstv %s793
    %v795 = vmul.f32 %v794, %v781
    %v796 = vadd.f32 %v766, %v795
    %s797 = sld [smem:[#allocation2 + $0x2e]]
    %v798 = vstv %s797
    %v799 = vmul.f32 %v798, %v773
    %v800 = vadd.f32 %v788, %v799
    %s801 = sld [smem:[#allocation2 + $0x64]]
    %v802 = vstv %s801
    %v803 = vmul.f32 %v802, %v773
    %v804 = vadd.f32 %v792, %v803
    %s805 = sld [smem:[#allocation2 + $0x9a]]
    %v806 = vstv %s805
    %v807 = vmul.f32 %v806, %v773
    %v808 = vadd.f32 %v796, %v807
    %s809 = sld [smem:[#allocation2 + $0x2f]]
    %v810 = vstv %s809
    %v811 = vmul.f32 %v810, %v784
    %v812 = vadd.f32 %v800, %v811
    %s813 = sld [smem:[#allocation2 + $0x65]]
    %v814 = vstv %s813
    %v815 = vmul.f32 %v814, %v784
    %v816 = vadd.f32 %v804, %v815
    %s817 = sld [smem:[#allocation2 + $0x9b]]
    %v818 = vstv %s817
    %v819 = vmul.f32 %v818, %v784
    %v820 = vadd.f32 %v808, %v819
    %821 = vrot.lane.b32.xlu0 %v768, 1
    %v822 = vpop.permute.xlu0 %821
    %v823 = vsel %vm69, %v822, 0.0
    %824 = vrot.lane.b32.xlu0 %v768, 127
    %v825 = vpop.permute.xlu0 %824
    %v826 = vsel %vm68, %v825, 0.0
    %s827 = sld [smem:[#allocation2 + $0x30]]
    %v828 = vstv %s827
    %v829 = vmul.f32 %v828, %v823
    %v830 = vadd.f32 %v812, %v829
    %s831 = sld [smem:[#allocation2 + $0x66]]
    %v832 = vstv %s831
    %v833 = vmul.f32 %v832, %v823
    %v834 = vadd.f32 %v816, %v833
    %s835 = sld [smem:[#allocation2 + $0x9c]]
    %v836 = vstv %s835
    %v837 = vmul.f32 %v836, %v823
    %v838 = vadd.f32 %v820, %v837
    %s839 = sld [smem:[#allocation2 + $0x31]]
    %v840 = vstv %s839
    %v841 = vmul.f32 %v840, %v768
    %v842 = vadd.f32 %v830, %v841
    %s843 = sld [smem:[#allocation2 + $0x67]]
    %v844 = vstv %s843
    %v845 = vmul.f32 %v844, %v768
    %v846 = vadd.f32 %v834, %v845
    %s847 = sld [smem:[#allocation2 + $0x9d]]
    %v848 = vstv %s847
    %v849 = vmul.f32 %v848, %v768
    %v850 = vadd.f32 %v838, %v849
    %s851 = sld [smem:[#allocation2 + $0x32]]
    %v852 = vstv %s851
    %v853 = vmul.f32 %v852, %v826
    %v854 = vadd.f32 %v842, %v853
    %s855 = sld [smem:[#allocation2 + $0x68]]
    %v856 = vstv %s855
    %v857 = vmul.f32 %v856, %v826
    %v858 = vadd.f32 %v846, %v857
    %s859 = sld [smem:[#allocation2 + $0x9e]]
    %v860 = vstv %s859
    %v861 = vmul.f32 %v860, %v826
    %v862 = vadd.f32 %v850, %v861
    %863 = vrot.lane.b32.xlu0 %v778, 1
    %v864 = vpop.permute.xlu0 %863
    %v865 = vsel %vm69, %v864, 0.0
    %866 = vrot.lane.b32.xlu0 %v778, 127
    %v867 = vpop.permute.xlu0 %866
    %v868 = vsel %vm68, %v867, 0.0
    %s869 = sld [smem:[#allocation2 + $0x33]]
    %v870 = vstv %s869
    %v871 = vmul.f32 %v870, %v865
    %v872 = vadd.f32 %v854, %v871
    %s873 = sld [smem:[#allocation2 + $0x69]]
    %v874 = vstv %s873
    %v875 = vmul.f32 %v874, %v865
    %v876 = vadd.f32 %v858, %v875
    %s877 = sld [smem:[#allocation2 + $0x9f]]
    %v878 = vstv %s877
    %v879 = vmul.f32 %v878, %v865
    %v880 = vadd.f32 %v862, %v879
    %s881 = sld [smem:[#allocation2 + $0x34]]
    %v882 = vstv %s881
    %v883 = vmul.f32 %v882, %v778
    %v884 = vadd.f32 %v872, %v883
    %s885 = sld [smem:[#allocation2 + $0x6a]]
    %v886 = vstv %s885
    %v887 = vmul.f32 %v886, %v778
    %v888 = vadd.f32 %v876, %v887
    %s889 = sld [smem:[#allocation2 + $0xa0]]
    %v890 = vstv %s889
    %v891 = vmul.f32 %v890, %v778
    %v892 = vadd.f32 %v880, %v891
    %s893 = sld [smem:[#allocation2 + $0x35]]
    %v894 = vstv %s893
    %v895 = vmul.f32 %v894, %v868
    %v896 = vadd.f32 %v884, %v895
    %s897 = sld [smem:[#allocation2 + $0x6b]]
    %v898 = vstv %s897
    %v899 = vmul.f32 %v898, %v868
    %v900 = vadd.f32 %v888, %v899
    %s901 = sld [smem:[#allocation2 + $0xa1]]
    %v902 = vstv %s901
    %v903 = vmul.f32 %v902, %v868
    %v904 = vadd.f32 %v892, %v903
    %905 = vst [vmem:[%s4] sm:$0xff] %v896
    %v906 = vld [vmem:[%s1] sm:$0xff]
    %v907 = vadd.f32 %v896, %v906
    %908 = vst [vmem:[%s5] sm:$0xff] %v907
    %s909 = scalar_lea.vmem %s4, 8
    %910 = vst [vmem:[%s909] sm:$0xff] %v900
    %s911 = scalar_lea.vmem %s1, 8
    %v912 = vld [vmem:[%s911] sm:$0xff]
    %v913 = vadd.f32 %v900, %v912
    %s914 = scalar_lea.vmem %s5, 8
    %915 = vst [vmem:[%s914] sm:$0xff] %v913
    %s916 = scalar_lea.vmem %s4, 16
    %917 = vst [vmem:[%s916] sm:$0xff] %v904
    %s918 = scalar_lea.vmem %s1, 16
    %v919 = vld [vmem:[%s918] sm:$0xff]
    %v920 = vadd.f32 %v904, %v919
    %s921 = scalar_lea.vmem %s5, 16
    %922 = vst [vmem:[%s921] sm:$0xff] %v920
    // Predicated region
    $region26: #{model_forward.1} parent=1 // pred_check
      _
    $region27: #{model_forward.1} parent=1 // pred_check_branch
      %924 = sbr.rel (0) target = $region29
    $region28: #{model_forward.1} parent=1 // pred_region
      _
    $region29: #{model_forward.1} parent=1 // pred_fallthru
      _
    // Predicated region
    $region30: #{model_forward.1} parent=1 // pred_check
      _
    $region31: #{model_forward.1} parent=1 // pred_check_branch
      %926 = sbr.rel (0) target = $region33
    $region32: #{model_forward.1} parent=1 // pred_region
      _
    $region33: #{model_forward.1} parent=1 // pred_fallthru
      _
    // Predicated region
    $region34: #{model_forward.1} parent=1 // pred_check
      _
    $region35: #{model_forward.1} parent=1 // pred_check_branch
      %928 = sbr.rel (0) target = $region37
    $region36: #{model_forward.1} parent=1 // pred_region
      _
    $region37: #{model_forward.1} parent=1 // pred_fallthru
      _
    // Predicated region
    $region38: #{model_forward.1} parent=1 // pred_check
      _
    $region39: #{model_forward.1} parent=1 // pred_check_branch
      %930 = sbr.rel (0) target = $region41
    $region40: #{model_forward.1} parent=1 // pred_region
      _
    $region41: #{model_forward.1} parent=1 // pred_fallthru
      _
    %931 = vsyncpa [#allocation3], 1
    %932 = vsyncpa [#allocation5], 1

</llo_original>
